<compile_context>
chip_gen: v7x
topology: tpu7x:2x2x1
jax: 0.10.0
libtpu: 0.0.40
codegen_flags: <defaults>
</compile_context>

<pallas_src>
import jax
import jax.numpy as jnp
from jax import lax
from jax.experimental import pallas as pl
from jax.experimental.pallas import tpu as pltpu

# ----------------------------- hyperparameters ------------------------------
BATCH = 256               # batch size (agents); multiple of BATCH_TILE
BATCH_TILE = 128          # rows per grid step -> well-filled MXU passes
AR_EMBED_SIZE = 32        # AHP.autoregressive_embedding_size (small synthetic)
ORIGINAL_256 = 32         # AHP.original_256 (small synthetic)
MAX_QUEUE = 8             # SFS.last_repeat_queued (small synthetic)
NUM_ACTIONS = 16          # size of the synthetic "can be queued" lookup table
IS_SL_TRAINING = True
TEMPERATURE = 1.0 if IS_SL_TRAINING else 0.8

LANES = 128               # TPU lane width; slabs are lane-dense (last dim 128)

assert max(AR_EMBED_SIZE, ORIGINAL_256, MAX_QUEUE, NUM_ACTIONS) <= LANES
assert AR_EMBED_SIZE + MAX_QUEUE + 1 <= LANES
assert BATCH % BATCH_TILE == 0 and BATCH_TILE % 8 == 0

# ----------------------- output slab column layout ---------------------------
O_AE = 0                                 # updated autoregressive_embedding [D]
O_LOGITS = O_AE + AR_EMBED_SIZE          # queue_logits                    [Q]
O_QUEUE = O_LOGITS + MAX_QUEUE           # sampled queue index (as float)  [1]
O_PAD = O_QUEUE + 1                      # zero padding up to 128 lanes


def _align8(n):
    return (n + 7) // 8 * 8


# ----------------------- packed parameter slab rows ---------------------------
# Every block starts on an 8-sublane boundary -> static ref slices stay
# tile-aligned (no hidden relayout copies).
_r = 0
R_W1 = _r; _r += _align8(AR_EMBED_SIZE)   # fc_1.weight^T  [D, H]
R_B1 = _r; _r += 8                        # fc_1.bias      [1, H]
R_W2 = _r; _r += _align8(ORIGINAL_256)    # fc_2.weight^T  [H, H]
R_B2 = _r; _r += 8                        # fc_2.bias      [1, H]
R_WE = _r; _r += _align8(ORIGINAL_256)    # embed_fc.weight^T [H, Q]
R_BE = _r; _r += 8                        # embed_fc.bias  [1, Q]
R_TAB = _r; _r += _align8(MAX_QUEUE)      # PRECOMPUTED project(relu(fc4(relu(fc3(I_Q))))) [Q, D]
R_CANQ = _r; _r += 8                      # action_can_be_queued table [1, NUM_ACTIONS]
SLAB_ROWS = _align8(_r)                   # = 136 rows (was 224)


# --------------------------------- kernel -----------------------------------
def queue_head_kernel(w_ref, ae_ref, gum_ref, act_ref, o_ref):
    """w_ref:   [SLAB_ROWS, 128] f32 param slab (same block every grid step)
       ae_ref:  [TB, D]  f32 autoregressive embedding tile
       gum_ref: [TB, Q]  f32 gumbel noise tile
       act_ref: [TB, 1]  int32 action-type ids tile
       o_ref:   [TB, 128] f32 output slab tile (ae_new | logits | queue | 0s)."""
    D, H, Q, NA = AR_EMBED_SIZE, ORIGINAL_256, MAX_QUEUE, NUM_ACTIONS
    TB = ae_ref.shape[0]
    f32 = jnp.float32

    ae = ae_ref[...]                                     # [TB, D]
    gumbel = gum_ref[...]                                # [TB, Q]
    act = act_ref[...]                                   # [TB, 1] int32

    # static slices of the packed parameter slab (zero runtime cost)
    w1 = w_ref[R_W1:R_W1 + D, 0:H]; b1 = w_ref[R_B1:R_B1 + 1, 0:H]
    w2 = w_ref[R_W2:R_W2 + H, 0:H]; b2 = w_ref[R_B2:R_B2 + 1, 0:H]
    we = w_ref[R_WE:R_WE + H, 0:Q]; be = w_ref[R_BE:R_BE + 1, 0:Q]
    table = w_ref[R_TAB:R_TAB + Q, 0:D]                  # [Q, D] precomputed
    can_q = w_ref[R_CANQ:R_CANQ + 1, 0:NA]               # [1, NA]

    # trunk: fc_1 -> relu -> fc_2 -> relu -> embed_fc -> /temperature
    x = jnp.maximum(jnp.dot(ae, w1, preferred_element_type=f32) + b1, 0.0)
    x = jnp.maximum(jnp.dot(x, w2, preferred_element_type=f32) + b2, 0.0)
    logits = (jnp.dot(x, we, preferred_element_type=f32) + be) * f32(1.0 / TEMPERATURE)

    # queue = multinomial(softmax(logits), 1) via Gumbel-max (VPU/XLU only)
    perturbed = logits + gumbel
    col = lax.broadcasted_iota(jnp.int32, (TB, Q), 1)
    row_max = jnp.max(perturbed, axis=-1, keepdims=True)
    sel = jnp.where(perturbed == row_max, col, jnp.int32(Q))
    queue_idx = jnp.min(sel, axis=-1, keepdims=True)      # [TB, 1] int32
    one_hot = (col == queue_idx).astype(f32)              # [TB, Q]

    # only one tiny matmul after the sample: row-select from precomputed table
    t = jnp.dot(one_hot, table, preferred_element_type=f32)      # [TB, D]

    # mask = action_can_be_queued(action_type): int32 compare + max-select
    a_iota = lax.broadcasted_iota(jnp.int32, (TB, NA), 1)
    mask = jnp.max(jnp.where(a_iota == act, can_q, f32(0.0)),
                   axis=-1, keepdims=True)                        # [TB, 1]

    ae_new = ae + mask * t

    # single unmasked full-width store of the lane-dense output slab
    pad = jnp.zeros((TB, LANES - O_PAD), f32)
    o_ref[...] = jnp.concatenate(
        [ae_new, logits, queue_idx.astype(f32), pad], axis=-1)


# ------------------------------- host wrapper --------------------------------
def _queue_head_forward_impl(param_slab, autoregressive_embedding, action_type,
                             gumbel_noise):
    B, D = autoregressive_embedding.shape
    H, Q = ORIGINAL_256, MAX_QUEUE
    TB = BATCH_TILE
    nb = B // TB

    ae = autoregressive_embedding.astype(jnp.float32)
    gum = gumbel_noise.astype(jnp.float32)
    act = action_type.reshape(B, 1).astype(jnp.int32)

    flops = 2 * B * (D * H + H * H + H * Q + Q * D)
    bytes_accessed = 4 * (SLAB_ROWS * LANES + B * (D + Q + 1) + B * LANES)

    out = pl.pallas_call(
        queue_head_kernel,
        out_shape=jax.ShapeDtypeStruct((B, LANES), jnp.float32),
        grid=(nb,),
        in_specs=[
            # param slab: constant block index -> DMA'd once, reused each step
            pl.BlockSpec((SLAB_ROWS, LANES), lambda i: (0, 0)),
            pl.BlockSpec((TB, D), lambda i: (i, 0)),
            pl.BlockSpec((TB, Q), lambda i: (i, 0)),
            pl.BlockSpec((TB, 1), lambda i: (i, 0)),
        ],
        out_specs=pl.BlockSpec((TB, LANES), lambda i: (i, 0)),
        compiler_params=pltpu.CompilerParams(
            dimension_semantics=("parallel",)),
        cost_estimate=pl.CostEstimate(
            flops=flops, transcendentals=0, bytes_accessed=bytes_accessed),
    )(param_slab, ae, gum, act)

    queue_logits = out[:, O_LOGITS:O_LOGITS + Q]
    queue = out[:, O_QUEUE:O_QUEUE + 1].astype(jnp.int32)
    ae_out = out[:, O_AE:O_AE + D]
    return queue_logits, queue, ae_out


queue_head_forward = jax.jit(_queue_head_forward_impl)


# ------------------------------ params & packing ------------------------------
def init_params(key):
    D, H, Q = AR_EMBED_SIZE, ORIGINAL_256, MAX_QUEUE
    ks = jax.random.split(key, 12)

    def lin(kw, kb, fan_in, fan_out):
        bound = 1.0 / jnp.sqrt(fan_in)
        w = jax.random.uniform(kw, (fan_in, fan_out), jnp.float32, -bound, bound)
        b = jax.random.uniform(kb, (1, fan_out), jnp.float32, -bound, bound)
        return w, b

    w1, b1 = lin(ks[0], ks[1], D, H)
    w2, b2 = lin(ks[2], ks[3], H, H)
    we, be = lin(ks[4], ks[5], H, Q)
    w3, b3 = lin(ks[6], ks[7], Q, H)
    w4, b4 = lin(ks[8], ks[9], H, H)
    wp, bp = lin(ks[10], ks[11], H, D)

    # Deterministic synthetic "action can be queued" table (even ids queueable).
    can_queue_table = (jnp.arange(NUM_ACTIONS, dtype=jnp.int32) % 2 == 0).astype(jnp.float32)

    return dict(w1=w1, b1=b1, w2=w2, b2=b2, we=we, be=be,
                w3=w3, b3=b3, w4=w4, b4=b4, wp=wp, bp=bp,
                can_queue_table=can_queue_table)


def pack_param_slab(p):
    """Pack trunk weights/biases + the PRECOMPUTED fc_3->fc_4->project table
    + the can-be-queued lookup table into one [SLAB_ROWS, 128] f32 slab.
    Valid because the table depends only on (static) weights, not on inputs."""
    # table[q] = project(relu(fc_4(relu(fc_3(one_hot(q))))))
    tz = jnp.maximum(p["w3"] + p["b3"], 0.0)                      # [Q, H]
    tz = jnp.maximum(tz @ p["w4"] + p["b4"], 0.0)                 # [Q, H]
    table = tz @ p["wp"] + p["bp"]                                # [Q, D]

    slab = jnp.zeros((SLAB_ROWS, LANES), jnp.float32)

    def put(s, row, arr):
        arr = jnp.asarray(arr, jnp.float32)
        if arr.ndim == 1:
            arr = arr[None, :]
        return s.at[row:row + arr.shape[0], 0:arr.shape[1]].set(arr)

    slab = put(slab, R_W1, p["w1"]); slab = put(slab, R_B1, p["b1"])
    slab = put(slab, R_W2, p["w2"]); slab = put(slab, R_B2, p["b2"])
    slab = put(slab, R_WE, p["we"]); slab = put(slab, R_BE, p["be"])
    slab = put(slab, R_TAB, table)
    slab = put(slab, R_CANQ, p["can_queue_table"])
    return slab


# ----------------------------------- main ------------------------------------
if __name__ == "__main__":
    key = jax.random.PRNGKey(0)
    k_param, k_ae, k_act, k_g = jax.random.split(key, 4)

    params = init_params(k_param)
    param_slab = pack_param_slab(params)          # built once, reused every call

    autoregressive_embedding = jax.random.normal(
        k_ae, (BATCH, AR_EMBED_SIZE), jnp.float32)
    action_type = jax.random.randint(
        k_act, (BATCH,), 0, NUM_ACTIONS, dtype=jnp.int32)
    gumbel_noise = jax.random.gumbel(k_g, (BATCH, MAX_QUEUE), jnp.float32)

    queue_logits, queue, ae_out = queue_head_forward(
        param_slab, autoregressive_embedding, action_type, gumbel_noise)
    jax.block_until_ready((queue_logits, queue, ae_out))

    # shape / range checks
    assert queue_logits.shape == (BATCH, MAX_QUEUE)
    assert queue.shape == (BATCH, 1)
    assert ae_out.shape == autoregressive_embedding.shape
    assert bool(jnp.all((queue >= 0) & (queue < MAX_QUEUE)))

    # pure-JAX reference (uses the kernel's sampled queue so the check is
    # insensitive to rounding near argmax ties).
    relu = lambda v: jnp.maximum(v, 0.0)
    xr = relu(autoregressive_embedding @ params["w1"] + params["b1"])
    xr = relu(xr @ params["w2"] + params["b2"])
    ref_logits = (xr @ params["we"] + params["be"]) / TEMPERATURE
    one_hot = jax.nn.one_hot(queue[:, 0], MAX_QUEUE, dtype=jnp.float32)
    zr = relu(one_hot @ params["w3"] + params["b3"])
    zr = relu(zr @ params["w4"] + params["b4"])
    tr = zr @ params["wp"] + params["bp"]
    mask = params["can_queue_table"][action_type][:, None]
    ref_ae_out = autoregressive_embedding + mask * tr

    assert float(jnp.max(jnp.abs(queue_logits - ref_logits))) < 5e-2
    assert float(jnp.max(jnp.abs(ae_out - ref_ae_out))) < 5e-2

    print("KERNEL_OK")
</pallas_src>

<mosaic_0001>
module attributes {stable_mosaic.version = 11 : i64} {
  func.func @queue_head_kernel(%arg0: i32, %arg1: memref<136x128xf32, #tpu.memory_space<vmem>>, %arg2: memref<128x32xf32, #tpu.memory_space<vmem>>, %arg3: memref<128x8xf32, #tpu.memory_space<vmem>>, %arg4: memref<128x1xi32, #tpu.memory_space<vmem>>, %arg5: memref<128x128xf32, #tpu.memory_space<vmem>>) attributes {dimension_semantics = [#tpu.dimension_semantics<parallel>], iteration_bounds = array<i64: 2>, scalar_prefetch = 0 : i64, scratch_operands = 0 : i64, tpu.core_type = #tpu.core_type<tc>, window_params = [{pipeline_mode = #tpu.pipeline_mode<synchronous>, transform_indices = @transform_0, window_bounds = array<i64: 136, 128>}, {transform_indices = @transform_1, window_bounds = array<i64: 128, 32>}, {transform_indices = @transform_2, window_bounds = array<i64: 128, 8>}, {transform_indices = @transform_3, window_bounds = array<i64: 128, 1>}, {transform_indices = @transform_4, window_bounds = array<i64: 128, 128>}]} {
    %c0 = arith.constant 0 : index
    %c0_0 = arith.constant 0 : index
    %0 = vector.load %arg2[%c0, %c0_0] : memref<128x32xf32, #tpu.memory_space<vmem>>, vector<128x32xf32>
    %c0_1 = arith.constant 0 : index
    %c0_2 = arith.constant 0 : index
    %1 = vector.load %arg3[%c0_1, %c0_2] : memref<128x8xf32, #tpu.memory_space<vmem>>, vector<128x8xf32>
    %c0_3 = arith.constant 0 : index
    %c0_4 = arith.constant 0 : index
    %2 = vector.load %arg4[%c0_3, %c0_4] : memref<128x1xi32, #tpu.memory_space<vmem>>, vector<128x1xi32>
    %c0_5 = arith.constant 0 : index
    %c0_6 = arith.constant 0 : index
    %3 = vector.load %arg1[%c0_5, %c0_6] : memref<136x128xf32, #tpu.memory_space<vmem>>, vector<32x32xf32>
    %c32 = arith.constant 32 : index
    %c0_7 = arith.constant 0 : index
    %4 = vector.load %arg1[%c32, %c0_7] : memref<136x128xf32, #tpu.memory_space<vmem>>, vector<1x32xf32>
    %c40 = arith.constant 40 : index
    %c0_8 = arith.constant 0 : index
    %5 = vector.load %arg1[%c40, %c0_8] : memref<136x128xf32, #tpu.memory_space<vmem>>, vector<32x32xf32>
    %c72 = arith.constant 72 : index
    %c0_9 = arith.constant 0 : index
    %6 = vector.load %arg1[%c72, %c0_9] : memref<136x128xf32, #tpu.memory_space<vmem>>, vector<1x32xf32>
    %c80 = arith.constant 80 : index
    %c0_10 = arith.constant 0 : index
    %7 = vector.load %arg1[%c80, %c0_10] : memref<136x128xf32, #tpu.memory_space<vmem>>, vector<32x8xf32>
    %c112 = arith.constant 112 : index
    %c0_11 = arith.constant 0 : index
    %8 = vector.load %arg1[%c112, %c0_11] : memref<136x128xf32, #tpu.memory_space<vmem>>, vector<1x8xf32>
    %c120 = arith.constant 120 : index
    %c0_12 = arith.constant 0 : index
    %9 = vector.load %arg1[%c120, %c0_12] : memref<136x128xf32, #tpu.memory_space<vmem>>, vector<8x32xf32>
    %c128 = arith.constant 128 : index
    %c0_13 = arith.constant 0 : index
    %10 = vector.load %arg1[%c128, %c0_13] : memref<136x128xf32, #tpu.memory_space<vmem>>, vector<1x16xf32>
    %cst = arith.constant dense<0.000000e+00> : vector<128x32xf32>
    %11 = tpu.matmul %0, %3, %cst {dimension_numbers = #tpu.dot_dimension_numbers<[1], [0], [0], [1], [0, 0, 1, 1], [], []>} : vector<128x32xf32>, vector<32x32xf32>, vector<128x32xf32> -> vector<128x32xf32>
    %12 = vector.broadcast %4 : vector<1x32xf32> to vector<128x32xf32>
    %13 = arith.addf %11, %12 : vector<128x32xf32>
    %cst_14 = arith.constant 0.000000e+00 : f32
    %14 = vector.broadcast %cst_14 : f32 to vector<128x32xf32>
    %15 = arith.maximumf %13, %14 : vector<128x32xf32>
    %cst_15 = arith.constant dense<0.000000e+00> : vector<128x32xf32>
    %16 = tpu.matmul %15, %5, %cst_15 {dimension_numbers = #tpu.dot_dimension_numbers<[1], [0], [0], [1], [0, 0, 1, 1], [], []>} : vector<128x32xf32>, vector<32x32xf32>, vector<128x32xf32> -> vector<128x32xf32>
    %17 = vector.broadcast %6 : vector<1x32xf32> to vector<128x32xf32>
    %18 = arith.addf %16, %17 : vector<128x32xf32>
    %cst_16 = arith.constant 0.000000e+00 : f32
    %19 = vector.broadcast %cst_16 : f32 to vector<128x32xf32>
    %20 = arith.maximumf %18, %19 : vector<128x32xf32>
    %cst_17 = arith.constant dense<0.000000e+00> : vector<128x8xf32>
    %21 = tpu.matmul %20, %7, %cst_17 {dimension_numbers = #tpu.dot_dimension_numbers<[1], [0], [0], [1], [0, 0, 1, 1], [], []>} : vector<128x32xf32>, vector<32x8xf32>, vector<128x8xf32> -> vector<128x8xf32>
    %22 = vector.broadcast %8 : vector<1x8xf32> to vector<128x8xf32>
    %23 = arith.addf %21, %22 : vector<128x8xf32>
    %cst_18 = arith.constant 1.000000e+00 : f32
    %24 = vector.broadcast %cst_18 : f32 to vector<128x8xf32>
    %25 = arith.mulf %23, %24 : vector<128x8xf32>
    %26 = arith.addf %25, %1 : vector<128x8xf32>
    %27 = tpu.iota {dimensions = array<i32: 1>} : vector<128x8xi32>
    %cst_19 = arith.constant dense<0xFF800000> : vector<128xf32>
    %28 = vector.multi_reduction <maximumf>, %26, %cst_19 [1] : vector<128x8xf32> to vector<128xf32>
    %29 = vector.shape_cast %28 : vector<128xf32> to vector<128x1xf32>
    %30 = vector.broadcast %29 : vector<128x1xf32> to vector<128x8xf32>
    %31 = arith.cmpf oeq, %26, %30 : vector<128x8xf32>
    %c8_i32 = arith.constant 8 : i32
    %32 = vector.broadcast %c8_i32 : i32 to vector<128x8xi32>
    %33 = arith.select %31, %27, %32 : vector<128x8xi1>, vector<128x8xi32>
    %cst_20 = arith.constant dense<2147483647> : vector<128xi32>
    %34 = vector.multi_reduction <minsi>, %33, %cst_20 [1] : vector<128x8xi32> to vector<128xi32>
    %35 = vector.shape_cast %34 : vector<128xi32> to vector<128x1xi32>
    %36 = vector.broadcast %35 : vector<128x1xi32> to vector<128x8xi32>
    %37 = arith.cmpi eq, %27, %36 : vector<128x8xi32>
    %38 = arith.extui %37 : vector<128x8xi1> to vector<128x8xi32>
    %39 = arith.sitofp %38 : vector<128x8xi32> to vector<128x8xf32>
    %cst_21 = arith.constant dense<0.000000e+00> : vector<128x32xf32>
    %40 = tpu.matmul %39, %9, %cst_21 {dimension_numbers = #tpu.dot_dimension_numbers<[1], [0], [0], [1], [0, 0, 1, 1], [], []>} : vector<128x8xf32>, vector<8x32xf32>, vector<128x32xf32> -> vector<128x32xf32>
    %41 = tpu.iota {dimensions = array<i32: 1>} : vector<128x16xi32>
    %42 = vector.broadcast %2 : vector<128x1xi32> to vector<128x16xi32>
    %43 = arith.cmpi eq, %41, %42 : vector<128x16xi32>
    %cst_22 = arith.constant 0.000000e+00 : f32
    %44 = vector.shape_cast %10 : vector<1x16xf32> to vector<1x16xf32>
    %45 = vector.broadcast %44 : vector<1x16xf32> to vector<128x16xf32>
    %46 = vector.broadcast %cst_22 : f32 to vector<128x16xf32>
    %47 = arith.select %43, %45, %46 : vector<128x16xi1>, vector<128x16xf32>
    %cst_23 = arith.constant dense<0xFF800000> : vector<128xf32>
    %48 = vector.multi_reduction <maximumf>, %47, %cst_23 [1] : vector<128x16xf32> to vector<128xf32>
    %49 = vector.shape_cast %48 : vector<128xf32> to vector<128x1xf32>
    %50 = vector.broadcast %49 : vector<128x1xf32> to vector<128x32xf32>
    %51 = arith.mulf %50, %40 : vector<128x32xf32>
    %52 = arith.addf %0, %51 : vector<128x32xf32>
    %cst_24 = arith.constant 0.000000e+00 : f32
    %53 = vector.broadcast %cst_24 : f32 to vector<128x87xf32>
    %54 = arith.sitofp %35 : vector<128x1xi32> to vector<128x1xf32>
    %55 = tpu.concatenate %52, %25, %54, %53 in 1 : vector<128x32xf32>, vector<128x8xf32>, vector<128x1xf32>, vector<128x87xf32> -> vector<128x128xf32>
    %c0_25 = arith.constant 0 : index
    %c0_26 = arith.constant 0 : index
    %56 = vector.load %arg5[%c0_25, %c0_26] : memref<128x128xf32, #tpu.memory_space<vmem>>, vector<128x128xf32>
    tpu.vector_store %arg5[%c0_25, %c0_26], %55 {strides = array<i32>} : memref<128x128xf32, #tpu.memory_space<vmem>>, vector<128x128xf32>,
    return
  }
  func.func @transform_0(%arg0: i32) -> (i32, i32) {
    %c0_i32 = arith.constant 0 : i32
    %c0_i32_0 = arith.constant 0 : i32
    %c0_i32_1 = arith.constant 0 : i32
    return %c0_i32, %c0_i32_0 : i32, i32
  }
  func.func @transform_1(%arg0: i32) -> (i32, i32) {
    %c0_i32 = arith.constant 0 : i32
    %c0_i32_0 = arith.constant 0 : i32
    return %arg0, %c0_i32 : i32, i32
  }
  func.func @transform_2(%arg0: i32) -> (i32, i32) {
    %c0_i32 = arith.constant 0 : i32
    %c0_i32_0 = arith.constant 0 : i32
    return %arg0, %c0_i32 : i32, i32
  }
  func.func @transform_3(%arg0: i32) -> (i32, i32) {
    %c0_i32 = arith.constant 0 : i32
    %c0_i32_0 = arith.constant 0 : i32
    return %arg0, %c0_i32 : i32, i32
  }
  func.func @transform_4(%arg0: i32) -> (i32, i32) {
    %c0_i32 = arith.constant 0 : i32
    %c0_i32_0 = arith.constant 0 : i32
    return %arg0, %c0_i32 : i32, i32
  }
}

</mosaic_0001>

<llo_original>
// kernel: _queue_head_forward_impl.1
$region0: #{_queue_head_forward_impl.1}
  #allocation0 [shape = 'u32[]', space=smem, size = 0x4, offset = 0x4, fixed_abs, tag = 'smem constant byte address 0x4 - core index']
  #allocation1 [shape = 'u32[144,128]{1,0:T(1,128)}', space=vmem, size = 0x12000, scoped, tag = 'internal scratch']
  %s0 = inlined_call_operand.vmem [shape: f32[136,128], index: 0, kind: input, shape index: {}]
  %s1 = inlined_call_operand.vmem [shape: f32[256,32], index: 1, kind: input, shape index: {}]
  %s2 = inlined_call_operand.vmem [shape: f32[256,8], index: 2, kind: input, shape index: {}]
  %s3 = inlined_call_operand.vmem [shape: s32[256,1], index: 3, kind: input, shape index: {}]
  %s4 = inlined_call_operand.vmem [shape: f32[256,128], index: 4, kind: output, shape index: {}]
  %s5 = sld [smem:[#allocation0]]
  $region49: #{_queue_head_forward_impl.1} parent=0
    _
  %s7 = ssub.s32 1, %s5
  %s8 = scalar_select 0, %s7, %s5
  loop: start=0, step=1, limit=4
  $region2: #{_queue_head_forward_impl.1} parent=0 // loop_pre_header
    _
  $region3: #{_queue_head_forward_impl.1} parent=0 // loop_header
    %s10 = sphi 0, %s14
    %p11 = scmp.ge.s32.totalorder %s10, 4
    %s18 = sphi 0, %s18
    %s20 = sphi 0, %s18
    %s21 = sphi 0, %s20
    %s35 = sphi 0, %s21
    %s41 = sphi 0, %s43
    %s44 = sphi 0, %s41
    %s45 = sphi 0, %s44
    %s61 = sphi 0, %s45
    %s67 = sphi 0, %s69
    %s70 = sphi 0, %s67
    %s71 = sphi 0, %s70
    %s87 = sphi 0, %s71
    %s93 = sphi 0, %s95
    %s96 = sphi 0, %s93
    %s97 = sphi 0, %s96
    %s113 = sphi 0, %s97
    %s119 = sphi 0, %s121
    %s122 = sphi 0, %s119
    %s123 = sphi 0, %s122
    %s139 = sphi 0, %s123
  $region4: #{_queue_head_forward_impl.1} parent=0 // loop_header_branch
    %13 = sbr.rel (%p11) target = $region8
  $region5: #{_queue_head_forward_impl.1} parent=0 // loop_body
    %s15 = ssub.s32 %s10, 1
    %s16 = ssub.s32 %s10, 2
    %s17 = sadd.s32 %s10, 1
    %s19 = sadd.s32 %s18, 1
    %p22 = scmp.eq.s32.totalorder %s10, 1
    %p23 = scmp.ne.s32.totalorder %s18, %s20
    %p24 = scmp.eq.s32.totalorder %s10, 0
    %p25 = por %p23, %p24
    %p26 = scmp.ne.s32.totalorder %s18, %s20
    %p27 = scmp.eq.s32.totalorder %s15, 1
    %p28 = por %p26, %p27
    %p29 = scmp.ne.s32.totalorder %s20, %s21
    %p30 = scmp.eq.s32.totalorder %s15, 0
    %p31 = por %p29, %p30
    %p32 = scmp.ne.s32.totalorder %s20, %s21
    %p33 = scmp.eq.s32.totalorder %s16, 1
    %p34 = por %p32, %p33
    %p36 = scmp.ne.s32.totalorder %s21, %s35
    %p37 = scmp.eq.s32.totalorder %s16, 0
    %p38 = por %p36, %p37
    %s39 = ssub.s32 %s10, %s17
    %p40 = scmp.eq.s32.totalorder %s39, 0
    %s42 = sadd.s32 %s41, 1
    %s43 = scalar_select %p40, %s41, %s42
    %p46 = pneg %p40
    %p47 = scmp.eq.s32.totalorder %s10, 1
    %p48 = por %p46, %p47
    %p49 = scmp.ne.s32.totalorder %s41, %s44
    %p50 = scmp.eq.s32.totalorder %s10, 0
    %p51 = por %p49, %p50
    %p52 = scmp.ne.s32.totalorder %s41, %s44
    %p53 = scmp.eq.s32.totalorder %s15, 1
    %p54 = por %p52, %p53
    %p55 = scmp.ne.s32.totalorder %s44, %s45
    %p56 = scmp.eq.s32.totalorder %s15, 0
    %p57 = por %p55, %p56
    %p58 = scmp.ne.s32.totalorder %s44, %s45
    %p59 = scmp.eq.s32.totalorder %s16, 1
    %p60 = por %p58, %p59
    %p62 = scmp.ne.s32.totalorder %s45, %s61
    %p63 = scmp.eq.s32.totalorder %s16, 0
    %p64 = por %p62, %p63
    %s65 = ssub.s32 %s10, %s17
    %p66 = scmp.eq.s32.totalorder %s65, 0
    %s68 = sadd.s32 %s67, 1
    %s69 = scalar_select %p66, %s67, %s68
    %p72 = pneg %p66
    %p73 = scmp.eq.s32.totalorder %s10, 1
    %p74 = por %p72, %p73
    %p75 = scmp.ne.s32.totalorder %s67, %s70
    %p76 = scmp.eq.s32.totalorder %s10, 0
    %p77 = por %p75, %p76
    %p78 = scmp.ne.s32.totalorder %s67, %s70
    %p79 = scmp.eq.s32.totalorder %s15, 1
    %p80 = por %p78, %p79
    %p81 = scmp.ne.s32.totalorder %s70, %s71
    %p82 = scmp.eq.s32.totalorder %s15, 0
    %p83 = por %p81, %p82
    %p84 = scmp.ne.s32.totalorder %s70, %s71
    %p85 = scmp.eq.s32.totalorder %s16, 1
    %p86 = por %p84, %p85
    %p88 = scmp.ne.s32.totalorder %s71, %s87
    %p89 = scmp.eq.s32.totalorder %s16, 0
    %p90 = por %p88, %p89
    %s91 = ssub.s32 %s10, %s17
    %p92 = scmp.eq.s32.totalorder %s91, 0
    %s94 = sadd.s32 %s93, 1
    %s95 = scalar_select %p92, %s93, %s94
    %p98 = pneg %p92
    %p99 = scmp.eq.s32.totalorder %s10, 1
    %p100 = por %p98, %p99
    %p101 = scmp.ne.s32.totalorder %s93, %s96
    %p102 = scmp.eq.s32.totalorder %s10, 0
    %p103 = por %p101, %p102
    %p104 = scmp.ne.s32.totalorder %s93, %s96
    %p105 = scmp.eq.s32.totalorder %s15, 1
    %p106 = por %p104, %p105
    %p107 = scmp.ne.s32.totalorder %s96, %s97
    %p108 = scmp.eq.s32.totalorder %s15, 0
    %p109 = por %p107, %p108
    %p110 = scmp.ne.s32.totalorder %s96, %s97
    %p111 = scmp.eq.s32.totalorder %s16, 1
    %p112 = por %p110, %p111
    %p114 = scmp.ne.s32.totalorder %s97, %s113
    %p115 = scmp.eq.s32.totalorder %s16, 0
    %p116 = por %p114, %p115
    %s117 = ssub.s32 %s10, %s17
    %p118 = scmp.eq.s32.totalorder %s117, 0
    %s120 = sadd.s32 %s119, 1
    %s121 = scalar_select %p118, %s119, %s120
    %p124 = pneg %p118
    %p125 = scmp.eq.s32.totalorder %s10, 1
    %p126 = por %p124, %p125
    %p127 = scmp.ne.s32.totalorder %s119, %s122
    %p128 = scmp.eq.s32.totalorder %s10, 0
    %p129 = por %p127, %p128
    %p130 = scmp.ne.s32.totalorder %s119, %s122
    %p131 = scmp.eq.s32.totalorder %s15, 1
    %p132 = por %p130, %p131
    %p133 = scmp.ne.s32.totalorder %s122, %s123
    %p134 = scmp.eq.s32.totalorder %s15, 0
    %p135 = por %p133, %p134
    %p136 = scmp.ne.s32.totalorder %s122, %s123
    %p137 = scmp.eq.s32.totalorder %s16, 1
    %p138 = por %p136, %p137
    %p140 = scmp.ne.s32.totalorder %s123, %s139
    %p141 = scmp.eq.s32.totalorder %s16, 0
    %p142 = por %p140, %p141
    %p143 = scmp.le.s32.totalorder 1, %s10
    %p144 = scmp.lt.s32.totalorder %s10, 3
    %p145 = pnand %p143, %p144
    %p146 = pneg %p145
    // Predicated region
    $region9: #{_queue_head_forward_impl.1} parent=5 // pred_check
      _
    $region10: #{_queue_head_forward_impl.1} parent=5 // pred_check_branch
      %148 = sbr.rel (%p145) target = $region12
    $region11: #{_queue_head_forward_impl.1} parent=5 // pred_region
      %s149 = ssub.s32 %s10, 1
      // Predicated region
      $region13: #{_queue_head_forward_impl.1} parent=11 // pred_check
        %p150 = pneg %p31
      $region14: #{_queue_head_forward_impl.1} parent=11 // pred_check_branch
        %152 = sbr.rel (%p150) target = $region16
      $region15: #{_queue_head_forward_impl.1} parent=11 // pred_region
        _
      $region16: #{_queue_head_forward_impl.1} parent=11 // pred_fallthru
        _
    $region12: #{_queue_head_forward_impl.1} parent=5 // pred_fallthru
      _
    %p153 = scmp.lt.s32.totalorder %s10, 2
    // Predicated region
    $region17: #{_queue_head_forward_impl.1} parent=5 // pred_check
      %p154 = pneg %p153
    $region18: #{_queue_head_forward_impl.1} parent=5 // pred_check_branch
      %156 = sbr.rel (%p154) target = $region20
    $region19: #{_queue_head_forward_impl.1} parent=5 // pred_region
      // Predicated region
      $region21: #{_queue_head_forward_impl.1} parent=19 // pred_check
        %p157 = pneg %p51
      $region22: #{_queue_head_forward_impl.1} parent=19 // pred_check_branch
        %159 = sbr.rel (%p157) target = $region24
      $region23: #{_queue_head_forward_impl.1} parent=19 // pred_region
        %s160 = smul.u32 16, %s10
        %p161 = scmp.lt.s32.totalorder %s160, 31
        %s162 = scalar_select %p161, %s160, 31
        %s163 = smul.addr %s162, 8
        %s164 = scalar_lea.vmem %s1, %s163
        %s165 = smul.u32 16, %s10
      $region24: #{_queue_head_forward_impl.1} parent=19 // pred_fallthru
        _
      // Predicated region
      $region25: #{_queue_head_forward_impl.1} parent=19 // pred_check
        %p166 = pneg %p77
      $region26: #{_queue_head_forward_impl.1} parent=19 // pred_check_branch
        %168 = sbr.rel (%p166) target = $region28
      $region27: #{_queue_head_forward_impl.1} parent=19 // pred_region
        %s169 = smul.u32 16, %s10
        %p170 = scmp.lt.s32.totalorder %s169, 31
        %s171 = scalar_select %p170, %s169, 31
        %s172 = smul.addr %s171, 8
        %s173 = scalar_lea.vmem %s2, %s172
        %s174 = smul.u32 16, %s10
      $region28: #{_queue_head_forward_impl.1} parent=19 // pred_fallthru
        _
      // Predicated region
      $region29: #{_queue_head_forward_impl.1} parent=19 // pred_check
        %p175 = pneg %p103
      $region30: #{_queue_head_forward_impl.1} parent=19 // pred_check_branch
        %177 = sbr.rel (%p175) target = $region32
      $region31: #{_queue_head_forward_impl.1} parent=19 // pred_region
        %s178 = smul.u32 16, %s10
        %p179 = scmp.lt.s32.totalorder %s178, 31
        %s180 = scalar_select %p179, %s178, 31
        %s181 = smul.addr %s180, 8
        %s182 = scalar_lea.vmem %s3, %s181
        %s183 = smul.u32 16, %s10
      $region32: #{_queue_head_forward_impl.1} parent=19 // pred_fallthru
        _
    $region20: #{_queue_head_forward_impl.1} parent=5 // pred_fallthru
      _
    %p184 = scmp.le.s32.totalorder 1, %s10
    %p185 = scmp.lt.s32.totalorder %s10, 3
    %p186 = pnand %p184, %p185
    %p187 = pneg %p186
    // Predicated region
    $region33: #{_queue_head_forward_impl.1} parent=5 // pred_check
      _
    $region34: #{_queue_head_forward_impl.1} parent=5 // pred_check_branch
      %189 = sbr.rel (%p186) target = $region36
    $region35: #{_queue_head_forward_impl.1} parent=5 // pred_region
      %s190 = ssub.s32 %s10, 1
      %p191 = pneg %p31
      %p192 = pneg %p28
      %s193 = smul.u32 16, %s15
      %p194 = scmp.lt.s32.totalorder %s193, 31
      %s195 = scalar_select %p194, %s193, 31
      %s196 = smul.addr %s195, 8
      %s197 = scalar_lea.vmem %s1, %s196
      %p198 = pneg %p57
      %p199 = pneg %p54
      %s200 = smul.u32 16, %s15
      %p201 = scmp.lt.s32.totalorder %s200, 31
      %s202 = scalar_select %p201, %s200, 31
      %s203 = smul.addr %s202, 8
      %s204 = scalar_lea.vmem %s2, %s203
      %p205 = pneg %p83
      %p206 = pneg %p80
      %s207 = smul.u32 16, %s15
      %p208 = scmp.lt.s32.totalorder %s207, 31
      %s209 = scalar_select %p208, %s207, 31
      %s210 = smul.addr %s209, 8
      %s211 = scalar_lea.vmem %s3, %s210
      %p212 = pneg %p109
      %p213 = pneg %p106
      %p214 = pneg %p135
      %p215 = pneg %p132
      %s216 = smul.u32 16, %s15
      %p217 = scmp.lt.s32.totalorder %s216, 31
      %s218 = scalar_select %p217, %s216, 31
      %s219 = smul.addr %s218, 8
      %s220 = scalar_lea.vmem %s4, %s219
      %s221 = smul.u32 16, %s15
      %p222 = scmp.lt.s32.totalorder %s221, 31
      %s223 = scalar_select %p222, %s221, 31
      %s224 = smul.addr %s223, 8
      %s225 = scalar_lea.vmem %s1, %s224
      %s226 = smul.u32 16, %s15
      %s227 = smul.u32 16, %s15
      %p228 = scmp.lt.s32.totalorder %s227, 31
      %s229 = scalar_select %p228, %s227, 31
      %s230 = smul.addr %s229, 8
      %s231 = scalar_lea.vmem %s2, %s230
      %s232 = smul.u32 16, %s15
      %s233 = smul.u32 16, %s15
      %p234 = scmp.lt.s32.totalorder %s233, 31
      %s235 = scalar_select %p234, %s233, 31
      %s236 = smul.addr %s235, 8
      %s237 = scalar_lea.vmem %s3, %s236
      %s238 = smul.u32 16, %s15
      %s239 = smul.u32 16, %s15
      %p240 = scmp.lt.s32.totalorder %s239, 31
      %s241 = scalar_select %p240, %s239, 31
      %s242 = smul.addr %s241, 8
      %s243 = scalar_lea.vmem %s4, %s242
      %s244 = smul.u32 16, %s15
      %v245 = vld [vmem:[%s225] sm:$0xff]
      %v246 = vld [vmem:[%s225 + $0x8] sm:$0xff]
      %v247 = vld [vmem:[%s225 + $0x10] sm:$0xff]
      %v248 = vld [vmem:[%s225 + $0x18] sm:$0xff]
      %v249 = vld [vmem:[%s225 + $0x20] sm:$0xff]
      %v250 = vld [vmem:[%s225 + $0x28] sm:$0xff]
      %v251 = vld [vmem:[%s225 + $0x30] sm:$0xff]
      %v252 = vld [vmem:[%s225 + $0x38] sm:$0xff]
      %v253 = vld [vmem:[%s225 + $0x40] sm:$0xff]
      %v254 = vld [vmem:[%s225 + $0x48] sm:$0xff]
      %v255 = vld [vmem:[%s225 + $0x50] sm:$0xff]
      %v256 = vld [vmem:[%s225 + $0x58] sm:$0xff]
      %v257 = vld [vmem:[%s225 + $0x60] sm:$0xff]
      %v258 = vld [vmem:[%s225 + $0x68] sm:$0xff]
      %v259 = vld [vmem:[%s225 + $0x70] sm:$0xff]
      %v260 = vld [vmem:[%s225 + $0x78] sm:$0xff]
      %v261 = vld [vmem:[%s231] sm:$0xff]
      %v262 = vld [vmem:[%s231 + $0x8] sm:$0xff]
      %v263 = vld [vmem:[%s231 + $0x10] sm:$0xff]
      %v264 = vld [vmem:[%s231 + $0x18] sm:$0xff]
      %v265 = vld [vmem:[%s231 + $0x20] sm:$0xff]
      %v266 = vld [vmem:[%s231 + $0x28] sm:$0xff]
      %v267 = vld [vmem:[%s231 + $0x30] sm:$0xff]
      %v268 = vld [vmem:[%s231 + $0x38] sm:$0xff]
      %v269 = vld [vmem:[%s231 + $0x40] sm:$0xff]
      %v270 = vld [vmem:[%s231 + $0x48] sm:$0xff]
      %v271 = vld [vmem:[%s231 + $0x50] sm:$0xff]
      %v272 = vld [vmem:[%s231 + $0x58] sm:$0xff]
      %v273 = vld [vmem:[%s231 + $0x60] sm:$0xff]
      %v274 = vld [vmem:[%s231 + $0x68] sm:$0xff]
      %v275 = vld [vmem:[%s231 + $0x70] sm:$0xff]
      %v276 = vld [vmem:[%s231 + $0x78] sm:$0xff]
      %v277 = vld [vmem:[%s237] sm:$0xff]
      %v278 = vld [vmem:[%s237 + $0x8] sm:$0xff]
      %v279 = vld [vmem:[%s237 + $0x10] sm:$0xff]
      %v280 = vld [vmem:[%s237 + $0x18] sm:$0xff]
      %v281 = vld [vmem:[%s237 + $0x20] sm:$0xff]
      %v282 = vld [vmem:[%s237 + $0x28] sm:$0xff]
      %v283 = vld [vmem:[%s237 + $0x30] sm:$0xff]
      %v284 = vld [vmem:[%s237 + $0x38] sm:$0xff]
      %v285 = vld [vmem:[%s237 + $0x40] sm:$0xff]
      %v286 = vld [vmem:[%s237 + $0x48] sm:$0xff]
      %v287 = vld [vmem:[%s237 + $0x50] sm:$0xff]
      %v288 = vld [vmem:[%s237 + $0x58] sm:$0xff]
      %v289 = vld [vmem:[%s237 + $0x60] sm:$0xff]
      %v290 = vld [vmem:[%s237 + $0x68] sm:$0xff]
      %v291 = vld [vmem:[%s237 + $0x70] sm:$0xff]
      %v292 = vld [vmem:[%s237 + $0x78] sm:$0xff]
      %v293 = vld [vmem:[%s0] sm:$0xff]
      %v294 = vld [vmem:[%s0 + $0x8] sm:$0xff]
      %v295 = vld [vmem:[%s0 + $0x10] sm:$0xff]
      %v296 = vld [vmem:[%s0 + $0x18] sm:$0xff]
      %v297 = vld [vmem:[%s0 + $0x20] sm:$0x1]
      %v298 = vld [vmem:[%s0 + $0x28] sm:$0xff]
      %v299 = vld [vmem:[%s0 + $0x30] sm:$0xff]
      %v300 = vld [vmem:[%s0 + $0x38] sm:$0xff]
      %v301 = vld [vmem:[%s0 + $0x40] sm:$0xff]
      %v302 = vld [vmem:[%s0 + $0x48] sm:$0x1]
      %v303 = vld [vmem:[%s0 + $0x50] sm:$0xff]
      %v304 = vld [vmem:[%s0 + $0x58] sm:$0xff]
      %v305 = vld [vmem:[%s0 + $0x60] sm:$0xff]
      %v306 = vld [vmem:[%s0 + $0x68] sm:$0xff]
      %v307 = vld [vmem:[%s0 + $0x70] sm:$0x1]
      %v308 = vld [vmem:[%s0 + $0x78] sm:$0xff]
      %v309 = vld [vmem:[%s0 + $0x80] sm:$0x1]
      %v310 = vlaneseq
      %v311 = vshrl.u32 %v310, 7
      %v312 = vsub.s32 0, %v311
      %v313 = vrot.slane %v297, %v312
      %vm314 = vcmask 261120
      %v316 = vsel %vm314, %v245, 0
      %v319 = vsel %vm314, %v246, 0
      %v322 = vsel %vm314, %v247, 0
      %v325 = vsel %vm314, %v248, 0
      %v328 = vsel %vm314, %v249, 0
      %v331 = vsel %vm314, %v250, 0
      %v334 = vsel %vm314, %v251, 0
      %v337 = vsel %vm314, %v252, 0
      %v340 = vsel %vm314, %v253, 0
      %v343 = vsel %vm314, %v254, 0
      %v346 = vsel %vm314, %v255, 0
      %v349 = vsel %vm314, %v256, 0
      %v352 = vsel %vm314, %v257, 0
      %v355 = vsel %vm314, %v258, 0
      %v358 = vsel %vm314, %v259, 0
      %v361 = vsel %vm314, %v260, 0
      %363 = vmatprep.subr.mxu0 0.0
      %364 = vmatpush1.msra.mxu0 %v293
      %365 = vmatprep.subr.mxu0 0.0
      %366 = vmatpush1.msra.mxu0 %v294
      %367 = vmatprep.subr.mxu0 0.0
      %368 = vmatpush1.msra.mxu0 %v295
      %369 = vmatprep.subr.mxu0 0.0
      %370 = vmatpush1.msra.mxu0 %v296
      %371 = vmatprep.subr.mxu0 0.0
      %372 = vmatpush1.msra.mxu0 0.0
      %373 = vmatprep.subr.mxu0 0.0
      %374 = vmatpush1.msra.mxu0 0.0
      %375 = vmatprep.subr.mxu0 0.0
      %376 = vmatpush1.msra.mxu0 0.0
      %377 = vmatprep.subr.mxu0 0.0
      %378 = vmatpush1.msra.mxu0 0.0
      %379 = vmatprep.subr.mxu0 0.0
      %380 = vmatpush1.msra.mxu0 0.0
      %381 = vmatprep.subr.mxu0 0.0
      %382 = vmatpush1.msra.mxu0 0.0
      %383 = vmatprep.subr.mxu0 0.0
      %384 = vmatpush1.msra.mxu0 0.0
      %385 = vmatprep.subr.mxu0 0.0
      %386 = vmatpush1.msra.mxu0 0.0
      %387 = vmatprep.subr.mxu0 0.0
      %388 = vmatpush1.msra.mxu0 0.0
      %389 = vmatprep.subr.mxu0 0.0
      %390 = vmatpush1.msra.mxu0 0.0
      %391 = vmatprep.subr.mxu0 0.0
      %392 = vmatpush1.msra.mxu0 0.0
      %393 = vmatprep.subr.mxu0 0.0
      %394 = vmatpush1.msra.mxu0 0.0
      %395 = vmatprep.subr.mxu0 0.0
      %396 = vmatpush1.msra.mxu0 0.0
      %397 = vmatprep.subr.mxu0 0.0
      %398 = vmatpush1.msra.mxu0 0.0
      %399 = vmatprep.subr.mxu0 0.0
      %400 = vmatpush1.msra.mxu0 0.0
      %401 = vmatprep.subr.mxu0 0.0
      %402 = vmatpush1.msra.mxu0 0.0
      %403 = vmatprep.subr.mxu0 0.0
      %404 = vmatpush1.msra.mxu0 0.0
      %405 = vmatprep.subr.mxu0 0.0
      %406 = vmatpush1.msra.mxu0 0.0
      %407 = vmatprep.subr.mxu0 0.0
      %408 = vmatpush1.msra.mxu0 0.0
      %409 = vmatprep.subr.mxu0 0.0
      %410 = vmatpush1.msra.mxu0 0.0
      %411 = vmatprep.subr.mxu0 0.0
      %412 = vmatpush1.msra.mxu0 0.0
      %413 = vmatprep.subr.mxu0 0.0
      %414 = vmatpush1.msra.mxu0 0.0
      %415 = vmatprep.subr.mxu0 0.0
      %416 = vmatpush1.msra.mxu0 0.0
      %417 = vmatprep.subr.mxu0 0.0
      %418 = vmatpush1.msra.mxu0 0.0
      %419 = vmatprep.subr.mxu0 0.0
      %420 = vmatpush1.msra.mxu0 0.0
      %421 = vmatprep.subr.mxu0 0.0
      %422 = vmatpush1.msra.mxu0 0.0
      %423 = vmatprep.subr.mxu0 0.0
      %424 = vmatpush1.msra.mxu0 0.0
      %425 = vmatprep.subr.mxu0 0.0
      %426 = vmatpush1.msra.mxu0 0.0
      %427 = vmatprep.mubr.f32.mxu0 0.0
      %428 = vmatmul.mubr.f32.gmra.mrb[0].mxu0 %v316
      %v429 = vpop.f32.mrb[0].mxu0
      %v430 = vadd.f32 %v313, %v429
      %v431 = vpop.f32.mrb[0].mxu0
      %432 = vmatprep.mubr.f32.mxu0 0.0
      %433 = vmatmul.mubr.f32.gmra.mrb[0].mxu0 %v319
      %v434 = vpop.f32.mrb[0].mxu0
      %v435 = vadd.f32 %v313, %v434
      %v436 = vpop.f32.mrb[0].mxu0
      %437 = vmatprep.mubr.f32.mxu0 0.0
      %438 = vmatmul.mubr.f32.gmra.mrb[0].mxu0 %v322
      %v439 = vpop.f32.mrb[0].mxu0
      %v440 = vadd.f32 %v313, %v439
      %v441 = vpop.f32.mrb[0].mxu0
      %442 = vmatprep.mubr.f32.mxu0 0.0
      %443 = vmatmul.mubr.f32.gmra.mrb[0].mxu0 %v325
      %v444 = vpop.f32.mrb[0].mxu0
      %v445 = vadd.f32 %v313, %v444
      %v446 = vpop.f32.mrb[0].mxu0
      %447 = vmatprep.mubr.f32.mxu0 0.0
      %448 = vmatmul.mubr.f32.gmra.mrb[0].mxu0 %v328
      %v449 = vpop.f32.mrb[0].mxu0
      %v450 = vadd.f32 %v313, %v449
      %v451 = vpop.f32.mrb[0].mxu0
      %452 = vmatprep.mubr.f32.mxu0 0.0
      %453 = vmatmul.mubr.f32.gmra.mrb[0].mxu0 %v331
      %v454 = vpop.f32.mrb[0].mxu0
      %v455 = vadd.f32 %v313, %v454
      %v456 = vpop.f32.mrb[0].mxu0
      %457 = vmatprep.mubr.f32.mxu0 0.0
      %458 = vmatmul.mubr.f32.gmra.mrb[0].mxu0 %v334
      %v459 = vpop.f32.mrb[0].mxu0
      %v460 = vadd.f32 %v313, %v459
      %v461 = vpop.f32.mrb[0].mxu0
      %462 = vmatprep.mubr.f32.mxu0 0.0
      %463 = vmatmul.mubr.f32.gmra.mrb[0].mxu0 %v337
      %v464 = vpop.f32.mrb[0].mxu0
      %v465 = vadd.f32 %v313, %v464
      %v466 = vpop.f32.mrb[0].mxu0
      %467 = vmatprep.mubr.f32.mxu0 0.0
      %468 = vmatmul.mubr.f32.gmra.mrb[0].mxu0 %v340
      %v469 = vpop.f32.mrb[0].mxu0
      %v470 = vadd.f32 %v313, %v469
      %v471 = vpop.f32.mrb[0].mxu0
      %472 = vmatprep.mubr.f32.mxu0 0.0
      %473 = vmatmul.mubr.f32.gmra.mrb[0].mxu0 %v343
      %v474 = vpop.f32.mrb[0].mxu0
      %v475 = vadd.f32 %v313, %v474
      %v476 = vpop.f32.mrb[0].mxu0
      %477 = vmatprep.mubr.f32.mxu0 0.0
      %478 = vmatmul.mubr.f32.gmra.mrb[0].mxu0 %v346
      %v479 = vpop.f32.mrb[0].mxu0
      %v480 = vadd.f32 %v313, %v479
      %v481 = vpop.f32.mrb[0].mxu0
      %482 = vmatprep.mubr.f32.mxu0 0.0
      %483 = vmatmul.mubr.f32.gmra.mrb[0].mxu0 %v349
      %v484 = vpop.f32.mrb[0].mxu0
      %v485 = vadd.f32 %v313, %v484
      %v486 = vpop.f32.mrb[0].mxu0
      %487 = vmatprep.mubr.f32.mxu0 0.0
      %488 = vmatmul.mubr.f32.gmra.mrb[0].mxu0 %v352
      %v489 = vpop.f32.mrb[0].mxu0
      %v490 = vadd.f32 %v313, %v489
      %v491 = vpop.f32.mrb[0].mxu0
      %492 = vmatprep.mubr.f32.mxu0 0.0
      %493 = vmatmul.mubr.f32.gmra.mrb[0].mxu0 %v355
      %v494 = vpop.f32.mrb[0].mxu0
      %v495 = vadd.f32 %v313, %v494
      %v496 = vpop.f32.mrb[0].mxu0
      %497 = vmatprep.mubr.f32.mxu0 0.0
      %498 = vmatmul.mubr.f32.gmra.mrb[0].mxu0 %v358
      %v499 = vpop.f32.mrb[0].mxu0
      %v500 = vadd.f32 %v313, %v499
      %v501 = vpop.f32.mrb[0].mxu0
      %502 = vmatprep.mubr.f32.mxu0 0.0
      %503 = vmatmul.mubr.f32.gmra.mrb[0].mxu0 %v361
      %v504 = vpop.f32.mrb[0].mxu0
      %v505 = vadd.f32 %v313, %v504
      %v506 = vpop.f32.mrb[0].mxu0
      %507 = vdwg.mxu0
      %v508 = vmax.f32 %v430, 0.0
      %v509 = vmax.f32 %v435, 0.0
      %v510 = vmax.f32 %v440, 0.0
      %v511 = vmax.f32 %v445, 0.0
      %v512 = vmax.f32 %v450, 0.0
      %v513 = vmax.f32 %v455, 0.0
      %v514 = vmax.f32 %v460, 0.0
      %v515 = vmax.f32 %v465, 0.0
      %v516 = vmax.f32 %v470, 0.0
      %v517 = vmax.f32 %v475, 0.0
      %v518 = vmax.f32 %v480, 0.0
      %v519 = vmax.f32 %v485, 0.0
      %v520 = vmax.f32 %v490, 0.0
      %v521 = vmax.f32 %v495, 0.0
      %v522 = vmax.f32 %v500, 0.0
      %v523 = vmax.f32 %v505, 0.0
      %v524 = vlaneseq
      %v525 = vshrl.u32 %v524, 7
      %v526 = vsub.s32 0, %v525
      %v527 = vrot.slane %v302, %v526
      %v529 = vsel %vm314, %v508, 0
      %v532 = vsel %vm314, %v509, 0
      %v535 = vsel %vm314, %v510, 0
      %v538 = vsel %vm314, %v511, 0
      %v541 = vsel %vm314, %v512, 0
      %v544 = vsel %vm314, %v513, 0
      %v547 = vsel %vm314, %v514, 0
      %v550 = vsel %vm314, %v515, 0
      %v553 = vsel %vm314, %v516, 0
      %v556 = vsel %vm314, %v517, 0
      %v559 = vsel %vm314, %v518, 0
      %v562 = vsel %vm314, %v519, 0
      %v565 = vsel %vm314, %v520, 0
      %v568 = vsel %vm314, %v521, 0
      %v571 = vsel %vm314, %v522, 0
      %v574 = vsel %vm314, %v523, 0
      %576 = vmatprep.subr.mxu0 0.0
      %577 = vmatpush1.msra.mxu0 %v298
      %578 = vmatprep.subr.mxu0 0.0
      %579 = vmatpush1.msra.mxu0 %v299
      %580 = vmatprep.subr.mxu0 0.0
      %581 = vmatpush1.msra.mxu0 %v300
      %582 = vmatprep.subr.mxu0 0.0
      %583 = vmatpush1.msra.mxu0 %v301
      %584 = vmatprep.subr.mxu0 0.0
      %585 = vmatpush1.msra.mxu0 0.0
      %586 = vmatprep.subr.mxu0 0.0
      %587 = vmatpush1.msra.mxu0 0.0
      %588 = vmatprep.subr.mxu0 0.0
      %589 = vmatpush1.msra.mxu0 0.0
      %590 = vmatprep.subr.mxu0 0.0
      %591 = vmatpush1.msra.mxu0 0.0
      %592 = vmatprep.subr.mxu0 0.0
      %593 = vmatpush1.msra.mxu0 0.0
      %594 = vmatprep.subr.mxu0 0.0
      %595 = vmatpush1.msra.mxu0 0.0
      %596 = vmatprep.subr.mxu0 0.0
      %597 = vmatpush1.msra.mxu0 0.0
      %598 = vmatprep.subr.mxu0 0.0
      %599 = vmatpush1.msra.mxu0 0.0
      %600 = vmatprep.subr.mxu0 0.0
      %601 = vmatpush1.msra.mxu0 0.0
      %602 = vmatprep.subr.mxu0 0.0
      %603 = vmatpush1.msra.mxu0 0.0
      %604 = vmatprep.subr.mxu0 0.0
      %605 = vmatpush1.msra.mxu0 0.0
      %606 = vmatprep.subr.mxu0 0.0
      %607 = vmatpush1.msra.mxu0 0.0
      %608 = vmatprep.subr.mxu0 0.0
      %609 = vmatpush1.msra.mxu0 0.0
      %610 = vmatprep.subr.mxu0 0.0
      %611 = vmatpush1.msra.mxu0 0.0
      %612 = vmatprep.subr.mxu0 0.0
      %613 = vmatpush1.msra.mxu0 0.0
      %614 = vmatprep.subr.mxu0 0.0
      %615 = vmatpush1.msra.mxu0 0.0
      %616 = vmatprep.subr.mxu0 0.0
      %617 = vmatpush1.msra.mxu0 0.0
      %618 = vmatprep.subr.mxu0 0.0
      %619 = vmatpush1.msra.mxu0 0.0
      %620 = vmatprep.subr.mxu0 0.0
      %621 = vmatpush1.msra.mxu0 0.0
      %622 = vmatprep.subr.mxu0 0.0
      %623 = vmatpush1.msra.mxu0 0.0
      %624 = vmatprep.subr.mxu0 0.0
      %625 = vmatpush1.msra.mxu0 0.0
      %626 = vmatprep.subr.mxu0 0.0
      %627 = vmatpush1.msra.mxu0 0.0
      %628 = vmatprep.subr.mxu0 0.0
      %629 = vmatpush1.msra.mxu0 0.0
      %630 = vmatprep.subr.mxu0 0.0
      %631 = vmatpush1.msra.mxu0 0.0
      %632 = vmatprep.subr.mxu0 0.0
      %633 = vmatpush1.msra.mxu0 0.0
      %634 = vmatprep.subr.mxu0 0.0
      %635 = vmatpush1.msra.mxu0 0.0
      %636 = vmatprep.subr.mxu0 0.0
      %637 = vmatpush1.msra.mxu0 0.0
      %638 = vmatprep.subr.mxu0 0.0
      %639 = vmatpush1.msra.mxu0 0.0
      %640 = vmatprep.mubr.f32.mxu0 0.0
      %641 = vmatmul.mubr.f32.gmra.mrb[0].mxu0 %v529
      %v642 = vpop.f32.mrb[0].mxu0
      %v643 = vadd.f32 %v527, %v642
      %v644 = vpop.f32.mrb[0].mxu0
      %645 = vmatprep.mubr.f32.mxu0 0.0
      %646 = vmatmul.mubr.f32.gmra.mrb[0].mxu0 %v532
      %v647 = vpop.f32.mrb[0].mxu0
      %v648 = vadd.f32 %v527, %v647
      %v649 = vpop.f32.mrb[0].mxu0
      %650 = vmatprep.mubr.f32.mxu0 0.0
      %651 = vmatmul.mubr.f32.gmra.mrb[0].mxu0 %v535
      %v652 = vpop.f32.mrb[0].mxu0
      %v653 = vadd.f32 %v527, %v652
      %v654 = vpop.f32.mrb[0].mxu0
      %655 = vmatprep.mubr.f32.mxu0 0.0
      %656 = vmatmul.mubr.f32.gmra.mrb[0].mxu0 %v538
      %v657 = vpop.f32.mrb[0].mxu0
      %v658 = vadd.f32 %v527, %v657
      %v659 = vpop.f32.mrb[0].mxu0
      %660 = vmatprep.mubr.f32.mxu0 0.0
      %661 = vmatmul.mubr.f32.gmra.mrb[0].mxu0 %v541
      %v662 = vpop.f32.mrb[0].mxu0
      %v663 = vadd.f32 %v527, %v662
      %v664 = vpop.f32.mrb[0].mxu0
      %665 = vmatprep.mubr.f32.mxu0 0.0
      %666 = vmatmul.mubr.f32.gmra.mrb[0].mxu0 %v544
      %v667 = vpop.f32.mrb[0].mxu0
      %v668 = vadd.f32 %v527, %v667
      %v669 = vpop.f32.mrb[0].mxu0
      %670 = vmatprep.mubr.f32.mxu0 0.0
      %671 = vmatmul.mubr.f32.gmra.mrb[0].mxu0 %v547
      %v672 = vpop.f32.mrb[0].mxu0
      %v673 = vadd.f32 %v527, %v672
      %v674 = vpop.f32.mrb[0].mxu0
      %675 = vmatprep.mubr.f32.mxu0 0.0
      %676 = vmatmul.mubr.f32.gmra.mrb[0].mxu0 %v550
      %v677 = vpop.f32.mrb[0].mxu0
      %v678 = vadd.f32 %v527, %v677
      %v679 = vpop.f32.mrb[0].mxu0
      %680 = vmatprep.mubr.f32.mxu0 0.0
      %681 = vmatmul.mubr.f32.gmra.mrb[0].mxu0 %v553
      %v682 = vpop.f32.mrb[0].mxu0
      %v683 = vadd.f32 %v527, %v682
      %v684 = vpop.f32.mrb[0].mxu0
      %685 = vmatprep.mubr.f32.mxu0 0.0
      %686 = vmatmul.mubr.f32.gmra.mrb[0].mxu0 %v556
      %v687 = vpop.f32.mrb[0].mxu0
      %v688 = vadd.f32 %v527, %v687
      %v689 = vpop.f32.mrb[0].mxu0
      %690 = vmatprep.mubr.f32.mxu0 0.0
      %691 = vmatmul.mubr.f32.gmra.mrb[0].mxu0 %v559
      %v692 = vpop.f32.mrb[0].mxu0
      %v693 = vadd.f32 %v527, %v692
      %v694 = vpop.f32.mrb[0].mxu0
      %695 = vmatprep.mubr.f32.mxu0 0.0
      %696 = vmatmul.mubr.f32.gmra.mrb[0].mxu0 %v562
      %v697 = vpop.f32.mrb[0].mxu0
      %v698 = vadd.f32 %v527, %v697
      %v699 = vpop.f32.mrb[0].mxu0
      %700 = vmatprep.mubr.f32.mxu0 0.0
      %701 = vmatmul.mubr.f32.gmra.mrb[0].mxu0 %v565
      %v702 = vpop.f32.mrb[0].mxu0
      %v703 = vadd.f32 %v527, %v702
      %v704 = vpop.f32.mrb[0].mxu0
      %705 = vmatprep.mubr.f32.mxu0 0.0
      %706 = vmatmul.mubr.f32.gmra.mrb[0].mxu0 %v568
      %v707 = vpop.f32.mrb[0].mxu0
      %v708 = vadd.f32 %v527, %v707
      %v709 = vpop.f32.mrb[0].mxu0
      %710 = vmatprep.mubr.f32.mxu0 0.0
      %711 = vmatmul.mubr.f32.gmra.mrb[0].mxu0 %v571
      %v712 = vpop.f32.mrb[0].mxu0
      %v713 = vadd.f32 %v527, %v712
      %v714 = vpop.f32.mrb[0].mxu0
      %715 = vmatprep.mubr.f32.mxu0 0.0
      %716 = vmatmul.mubr.f32.gmra.mrb[0].mxu0 %v574
      %v717 = vpop.f32.mrb[0].mxu0
      %v718 = vadd.f32 %v527, %v717
      %v719 = vpop.f32.mrb[0].mxu0
      %720 = vdwg.mxu0
      %v721 = vmax.f32 %v643, 0.0
      %v722 = vmax.f32 %v648, 0.0
      %v723 = vmax.f32 %v653, 0.0
      %v724 = vmax.f32 %v658, 0.0
      %v725 = vmax.f32 %v663, 0.0
      %v726 = vmax.f32 %v668, 0.0
      %v727 = vmax.f32 %v673, 0.0
      %v728 = vmax.f32 %v678, 0.0
      %v729 = vmax.f32 %v683, 0.0
      %v730 = vmax.f32 %v688, 0.0
      %v731 = vmax.f32 %v693, 0.0
      %v732 = vmax.f32 %v698, 0.0
      %v733 = vmax.f32 %v703, 0.0
      %v734 = vmax.f32 %v708, 0.0
      %v735 = vmax.f32 %v713, 0.0
      %v736 = vmax.f32 %v718, 0.0
      %v737 = vlaneseq
      %v738 = vshrl.u32 %v737, 7
      %v739 = vsub.s32 0, %v738
      %v740 = vrot.slane %v307, %v739
      %v742 = vsel %vm314, %v721, 0
      %v745 = vsel %vm314, %v722, 0
      %v748 = vsel %vm314, %v723, 0
      %v751 = vsel %vm314, %v724, 0
      %v754 = vsel %vm314, %v725, 0
      %v757 = vsel %vm314, %v726, 0
      %v760 = vsel %vm314, %v727, 0
      %v763 = vsel %vm314, %v728, 0
      %v766 = vsel %vm314, %v729, 0
      %v769 = vsel %vm314, %v730, 0
      %v772 = vsel %vm314, %v731, 0
      %v775 = vsel %vm314, %v732, 0
      %v778 = vsel %vm314, %v733, 0
      %v781 = vsel %vm314, %v734, 0
      %v784 = vsel %vm314, %v735, 0
      %v787 = vsel %vm314, %v736, 0
      %789 = vmatprep.subr.mxu0 0.0
      %790 = vmatpush1.msra.mxu0 %v303
      %791 = vmatprep.subr.mxu0 0.0
      %792 = vmatpush1.msra.mxu0 %v304
      %793 = vmatprep.subr.mxu0 0.0
      %794 = vmatpush1.msra.mxu0 %v305
      %795 = vmatprep.subr.mxu0 0.0
      %796 = vmatpush1.msra.mxu0 %v306
      %797 = vmatprep.subr.mxu0 0.0
      %798 = vmatpush1.msra.mxu0 0.0
      %799 = vmatprep.subr.mxu0 0.0
      %800 = vmatpush1.msra.mxu0 0.0
      %801 = vmatprep.subr.mxu0 0.0
      %802 = vmatpush1.msra.mxu0 0.0
      %803 = vmatprep.subr.mxu0 0.0
      %804 = vmatpush1.msra.mxu0 0.0
      %805 = vmatprep.subr.mxu0 0.0
      %806 = vmatpush1.msra.mxu0 0.0
      %807 = vmatprep.subr.mxu0 0.0
      %808 = vmatpush1.msra.mxu0 0.0
      %809 = vmatprep.subr.mxu0 0.0
      %810 = vmatpush1.msra.mxu0 0.0
      %811 = vmatprep.subr.mxu0 0.0
      %812 = vmatpush1.msra.mxu0 0.0
      %813 = vmatprep.subr.mxu0 0.0
      %814 = vmatpush1.msra.mxu0 0.0
      %815 = vmatprep.subr.mxu0 0.0
      %816 = vmatpush1.msra.mxu0 0.0
      %817 = vmatprep.subr.mxu0 0.0
      %818 = vmatpush1.msra.mxu0 0.0
      %819 = vmatprep.subr.mxu0 0.0
      %820 = vmatpush1.msra.mxu0 0.0
      %821 = vmatprep.subr.mxu0 0.0
      %822 = vmatpush1.msra.mxu0 0.0
      %823 = vmatprep.subr.mxu0 0.0
      %824 = vmatpush1.msra.mxu0 0.0
      %825 = vmatprep.subr.mxu0 0.0
      %826 = vmatpush1.msra.mxu0 0.0
      %827 = vmatprep.subr.mxu0 0.0
      %828 = vmatpush1.msra.mxu0 0.0
      %829 = vmatprep.subr.mxu0 0.0
      %830 = vmatpush1.msra.mxu0 0.0
      %831 = vmatprep.subr.mxu0 0.0
      %832 = vmatpush1.msra.mxu0 0.0
      %833 = vmatprep.subr.mxu0 0.0
      %834 = vmatpush1.msra.mxu0 0.0
      %835 = vmatprep.subr.mxu0 0.0
      %836 = vmatpush1.msra.mxu0 0.0
      %837 = vmatprep.subr.mxu0 0.0
      %838 = vmatpush1.msra.mxu0 0.0
      %839 = vmatprep.subr.mxu0 0.0
      %840 = vmatpush1.msra.mxu0 0.0
      %841 = vmatprep.subr.mxu0 0.0
      %842 = vmatpush1.msra.mxu0 0.0
      %843 = vmatprep.subr.mxu0 0.0
      %844 = vmatpush1.msra.mxu0 0.0
      %845 = vmatprep.subr.mxu0 0.0
      %846 = vmatpush1.msra.mxu0 0.0
      %847 = vmatprep.subr.mxu0 0.0
      %848 = vmatpush1.msra.mxu0 0.0
      %849 = vmatprep.subr.mxu0 0.0
      %850 = vmatpush1.msra.mxu0 0.0
      %851 = vmatprep.subr.mxu0 0.0
      %852 = vmatpush1.msra.mxu0 0.0
      %853 = vmatprep.mubr.f32.mxu0 0.0
      %854 = vmatmul.mubr.f32.gmra.mrb[0].mxu0 %v742
      %v855 = vpop.f32.mrb[0].mxu0
      %v856 = vadd.f32 %v740, %v855
      %v857 = vpop.f32.mrb[0].mxu0
      %858 = vmatprep.mubr.f32.mxu0 0.0
      %859 = vmatmul.mubr.f32.gmra.mrb[0].mxu0 %v745
      %v860 = vpop.f32.mrb[0].mxu0
      %v861 = vadd.f32 %v740, %v860
      %v862 = vpop.f32.mrb[0].mxu0
      %863 = vmatprep.mubr.f32.mxu0 0.0
      %864 = vmatmul.mubr.f32.gmra.mrb[0].mxu0 %v748
      %v865 = vpop.f32.mrb[0].mxu0
      %v866 = vadd.f32 %v740, %v865
      %v867 = vpop.f32.mrb[0].mxu0
      %868 = vmatprep.mubr.f32.mxu0 0.0
      %869 = vmatmul.mubr.f32.gmra.mrb[0].mxu0 %v751
      %v870 = vpop.f32.mrb[0].mxu0
      %v871 = vadd.f32 %v740, %v870
      %v872 = vpop.f32.mrb[0].mxu0
      %873 = vmatprep.mubr.f32.mxu0 0.0
      %874 = vmatmul.mubr.f32.gmra.mrb[0].mxu0 %v754
      %v875 = vpop.f32.mrb[0].mxu0
      %v876 = vadd.f32 %v740, %v875
      %v877 = vpop.f32.mrb[0].mxu0
      %878 = vmatprep.mubr.f32.mxu0 0.0
      %879 = vmatmul.mubr.f32.gmra.mrb[0].mxu0 %v757
      %v880 = vpop.f32.mrb[0].mxu0
      %v881 = vadd.f32 %v740, %v880
      %v882 = vpop.f32.mrb[0].mxu0
      %883 = vmatprep.mubr.f32.mxu0 0.0
      %884 = vmatmul.mubr.f32.gmra.mrb[0].mxu0 %v760
      %v885 = vpop.f32.mrb[0].mxu0
      %v886 = vadd.f32 %v740, %v885
      %v887 = vpop.f32.mrb[0].mxu0
      %888 = vmatprep.mubr.f32.mxu0 0.0
      %889 = vmatmul.mubr.f32.gmra.mrb[0].mxu0 %v763
      %v890 = vpop.f32.mrb[0].mxu0
      %v891 = vadd.f32 %v740, %v890
      %v892 = vpop.f32.mrb[0].mxu0
      %893 = vmatprep.mubr.f32.mxu0 0.0
      %894 = vmatmul.mubr.f32.gmra.mrb[0].mxu0 %v766
      %v895 = vpop.f32.mrb[0].mxu0
      %v896 = vadd.f32 %v740, %v895
      %v897 = vpop.f32.mrb[0].mxu0
      %898 = vmatprep.mubr.f32.mxu0 0.0
      %899 = vmatmul.mubr.f32.gmra.mrb[0].mxu0 %v769
      %v900 = vpop.f32.mrb[0].mxu0
      %v901 = vadd.f32 %v740, %v900
      %v902 = vpop.f32.mrb[0].mxu0
      %903 = vmatprep.mubr.f32.mxu0 0.0
      %904 = vmatmul.mubr.f32.gmra.mrb[0].mxu0 %v772
      %v905 = vpop.f32.mrb[0].mxu0
      %v906 = vadd.f32 %v740, %v905
      %v907 = vpop.f32.mrb[0].mxu0
      %908 = vmatprep.mubr.f32.mxu0 0.0
      %909 = vmatmul.mubr.f32.gmra.mrb[0].mxu0 %v775
      %v910 = vpop.f32.mrb[0].mxu0
      %v911 = vadd.f32 %v740, %v910
      %v912 = vpop.f32.mrb[0].mxu0
      %913 = vmatprep.mubr.f32.mxu0 0.0
      %914 = vmatmul.mubr.f32.gmra.mrb[0].mxu0 %v778
      %v915 = vpop.f32.mrb[0].mxu0
      %v916 = vadd.f32 %v740, %v915
      %v917 = vpop.f32.mrb[0].mxu0
      %918 = vmatprep.mubr.f32.mxu0 0.0
      %919 = vmatmul.mubr.f32.gmra.mrb[0].mxu0 %v781
      %v920 = vpop.f32.mrb[0].mxu0
      %v921 = vadd.f32 %v740, %v920
      %v922 = vpop.f32.mrb[0].mxu0
      %923 = vmatprep.mubr.f32.mxu0 0.0
      %924 = vmatmul.mubr.f32.gmra.mrb[0].mxu0 %v784
      %v925 = vpop.f32.mrb[0].mxu0
      %v926 = vadd.f32 %v740, %v925
      %v927 = vpop.f32.mrb[0].mxu0
      %928 = vmatprep.mubr.f32.mxu0 0.0
      %929 = vmatmul.mubr.f32.gmra.mrb[0].mxu0 %v787
      %v930 = vpop.f32.mrb[0].mxu0
      %v931 = vadd.f32 %v740, %v930
      %v932 = vpop.f32.mrb[0].mxu0
      %933 = vdwg.mxu0
      %v934 = vadd.f32 %v856, %v261
      %v935 = vadd.f32 %v861, %v262
      %v936 = vadd.f32 %v866, %v263
      %v937 = vadd.f32 %v871, %v264
      %v938 = vadd.f32 %v876, %v265
      %v939 = vadd.f32 %v881, %v266
      %v940 = vadd.f32 %v886, %v267
      %v941 = vadd.f32 %v891, %v268
      %v942 = vadd.f32 %v896, %v269
      %v943 = vadd.f32 %v901, %v270
      %v944 = vadd.f32 %v906, %v271
      %v945 = vadd.f32 %v911, %v272
      %v946 = vadd.f32 %v916, %v273
      %v947 = vadd.f32 %v921, %v274
      %v948 = vadd.f32 %v926, %v275
      %v949 = vadd.f32 %v931, %v276
      %v950 = vlaneseq
      %v951 = vand.u32 %v950, 127
      %vm952 = vcmask 64512
      %v953 = vsel %vm952, %v934, -inf
      %954 = vmax.xlane.f32.xlu0 %v953
      %v955 = vpop.xlane.xlu0 %954
      %v956 = vsel %vm952, %v935, -inf
      %957 = vmax.xlane.f32.xlu0 %v956
      %v958 = vpop.xlane.xlu0 %957
      %v959 = vsel %vm952, %v936, -inf
      %960 = vmax.xlane.f32.xlu0 %v959
      %v961 = vpop.xlane.xlu0 %960
      %v962 = vsel %vm952, %v937, -inf
      %963 = vmax.xlane.f32.xlu0 %v962
      %v964 = vpop.xlane.xlu0 %963
      %v965 = vsel %vm952, %v938, -inf
      %966 = vmax.xlane.f32.xlu0 %v965
      %v967 = vpop.xlane.xlu0 %966
      %v968 = vsel %vm952, %v939, -inf
      %969 = vmax.xlane.f32.xlu0 %v968
      %v970 = vpop.xlane.xlu0 %969
      %v971 = vsel %vm952, %v940, -inf
      %972 = vmax.xlane.f32.xlu0 %v971
      %v973 = vpop.xlane.xlu0 %972
      %v974 = vsel %vm952, %v941, -inf
      %975 = vmax.xlane.f32.xlu0 %v974
      %v976 = vpop.xlane.xlu0 %975
      %v977 = vsel %vm952, %v942, -inf
      %978 = vmax.xlane.f32.xlu0 %v977
      %v979 = vpop.xlane.xlu0 %978
      %v980 = vsel %vm952, %v943, -inf
      %981 = vmax.xlane.f32.xlu0 %v980
      %v982 = vpop.xlane.xlu0 %981
      %v983 = vsel %vm952, %v944, -inf
      %984 = vmax.xlane.f32.xlu0 %v983
      %v985 = vpop.xlane.xlu0 %984
      %v986 = vsel %vm952, %v945, -inf
      %987 = vmax.xlane.f32.xlu0 %v986
      %v988 = vpop.xlane.xlu0 %987
      %v989 = vsel %vm952, %v946, -inf
      %990 = vmax.xlane.f32.xlu0 %v989
      %v991 = vpop.xlane.xlu0 %990
      %v992 = vsel %vm952, %v947, -inf
      %993 = vmax.xlane.f32.xlu0 %v992
      %v994 = vpop.xlane.xlu0 %993
      %v995 = vsel %vm952, %v948, -inf
      %996 = vmax.xlane.f32.xlu0 %v995
      %v997 = vpop.xlane.xlu0 %996
      %v998 = vsel %vm952, %v949, -inf
      %999 = vmax.xlane.f32.xlu0 %v998
      %v1000 = vpop.xlane.xlu0 %999
      %vm1001 = vcmp.eq.f32.partialorder %v934, %v955
      %vm1002 = vcmp.eq.f32.partialorder %v935, %v958
      %vm1003 = vcmp.eq.f32.partialorder %v936, %v961
      %vm1004 = vcmp.eq.f32.partialorder %v937, %v964
      %vm1005 = vcmp.eq.f32.partialorder %v938, %v967
      %vm1006 = vcmp.eq.f32.partialorder %v939, %v970
      %vm1007 = vcmp.eq.f32.partialorder %v940, %v973
      %vm1008 = vcmp.eq.f32.partialorder %v941, %v976
      %vm1009 = vcmp.eq.f32.partialorder %v942, %v979
      %vm1010 = vcmp.eq.f32.partialorder %v943, %v982
      %vm1011 = vcmp.eq.f32.partialorder %v944, %v985
      %vm1012 = vcmp.eq.f32.partialorder %v945, %v988
      %vm1013 = vcmp.eq.f32.partialorder %v946, %v991
      %vm1014 = vcmp.eq.f32.partialorder %v947, %v994
      %vm1015 = vcmp.eq.f32.partialorder %v948, %v997
      %vm1016 = vcmp.eq.f32.partialorder %v949, %v1000
      %v1017 = vsel %vm1001, %v951, 8
      %v1018 = vsel %vm1002, %v951, 8
      %v1019 = vsel %vm1003, %v951, 8
      %v1020 = vsel %vm1004, %v951, 8
      %v1021 = vsel %vm1005, %v951, 8
      %v1022 = vsel %vm1006, %v951, 8
      %v1023 = vsel %vm1007, %v951, 8
      %v1024 = vsel %vm1008, %v951, 8
      %v1025 = vsel %vm1009, %v951, 8
      %v1026 = vsel %vm1010, %v951, 8
      %v1027 = vsel %vm1011, %v951, 8
      %v1028 = vsel %vm1012, %v951, 8
      %v1029 = vsel %vm1013, %v951, 8
      %v1030 = vsel %vm1014, %v951, 8
      %v1031 = vsel %vm1015, %v951, 8
      %v1032 = vsel %vm1016, %v951, 8
      %v1033 = vsel %vm952, %v1017, 2147483647
      %v1034 = vand.u32 %v1033, 65535
      %v1035 = vshra.s32 %v1033, 16
      %v1036 = vcvt.s32.f32 %v1034
      %v1037 = vcvt.s32.f32 %v1035
      %1038 = vmin.xlane.f32.xlu0 %v1037
      %v1039 = vpop.xlane.xlu0 %1038
      %vm1040 = vcmp.eq.f32.partialorder %v1037, %v1039
      %v1041 = vsel %vm1040, %v1036, inf
      %1042 = vmin.xlane.f32.xlu0 %v1041
      %v1043 = vpop.xlane.xlu0 %1042
      %v1044 = vcvt.f32.s32 %v1043
      %v1045 = vcvt.f32.s32 %v1039
      %v1046 = vshll.u32 %v1045, 16
      %v1047 = vadd.s32 %v1046, %v1044
      %v1048 = vsel %vm952, %v1018, 2147483647
      %v1049 = vand.u32 %v1048, 65535
      %v1050 = vshra.s32 %v1048, 16
      %v1051 = vcvt.s32.f32 %v1049
      %v1052 = vcvt.s32.f32 %v1050
      %1053 = vmin.xlane.f32.xlu0 %v1052
      %v1054 = vpop.xlane.xlu0 %1053
      %vm1055 = vcmp.eq.f32.partialorder %v1052, %v1054
      %v1056 = vsel %vm1055, %v1051, inf
      %1057 = vmin.xlane.f32.xlu0 %v1056
      %v1058 = vpop.xlane.xlu0 %1057
      %v1059 = vcvt.f32.s32 %v1058
      %v1060 = vcvt.f32.s32 %v1054
      %v1061 = vshll.u32 %v1060, 16
      %v1062 = vadd.s32 %v1061, %v1059
      %v1063 = vsel %vm952, %v1019, 2147483647
      %v1064 = vand.u32 %v1063, 65535
      %v1065 = vshra.s32 %v1063, 16
      %v1066 = vcvt.s32.f32 %v1064
      %v1067 = vcvt.s32.f32 %v1065
      %1068 = vmin.xlane.f32.xlu0 %v1067
      %v1069 = vpop.xlane.xlu0 %1068
      %vm1070 = vcmp.eq.f32.partialorder %v1067, %v1069
      %v1071 = vsel %vm1070, %v1066, inf
      %1072 = vmin.xlane.f32.xlu0 %v1071
      %v1073 = vpop.xlane.xlu0 %1072
      %v1074 = vcvt.f32.s32 %v1073
      %v1075 = vcvt.f32.s32 %v1069
      %v1076 = vshll.u32 %v1075, 16
      %v1077 = vadd.s32 %v1076, %v1074
      %v1078 = vsel %vm952, %v1020, 2147483647
      %v1079 = vand.u32 %v1078, 65535
      %v1080 = vshra.s32 %v1078, 16
      %v1081 = vcvt.s32.f32 %v1079
      %v1082 = vcvt.s32.f32 %v1080
      %1083 = vmin.xlane.f32.xlu0 %v1082
      %v1084 = vpop.xlane.xlu0 %1083
      %vm1085 = vcmp.eq.f32.partialorder %v1082, %v1084
      %v1086 = vsel %vm1085, %v1081, inf
      %1087 = vmin.xlane.f32.xlu0 %v1086
      %v1088 = vpop.xlane.xlu0 %1087
      %v1089 = vcvt.f32.s32 %v1088
      %v1090 = vcvt.f32.s32 %v1084
      %v1091 = vshll.u32 %v1090, 16
      %v1092 = vadd.s32 %v1091, %v1089
      %v1093 = vsel %vm952, %v1021, 2147483647
      %v1094 = vand.u32 %v1093, 65535
      %v1095 = vshra.s32 %v1093, 16
      %v1096 = vcvt.s32.f32 %v1094
      %v1097 = vcvt.s32.f32 %v1095
      %1098 = vmin.xlane.f32.xlu0 %v1097
      %v1099 = vpop.xlane.xlu0 %1098
      %vm1100 = vcmp.eq.f32.partialorder %v1097, %v1099
      %v1101 = vsel %vm1100, %v1096, inf
      %1102 = vmin.xlane.f32.xlu0 %v1101
      %v1103 = vpop.xlane.xlu0 %1102
      %v1104 = vcvt.f32.s32 %v1103
      %v1105 = vcvt.f32.s32 %v1099
      %v1106 = vshll.u32 %v1105, 16
      %v1107 = vadd.s32 %v1106, %v1104
      %v1108 = vsel %vm952, %v1022, 2147483647
      %v1109 = vand.u32 %v1108, 65535
      %v1110 = vshra.s32 %v1108, 16
      %v1111 = vcvt.s32.f32 %v1109
      %v1112 = vcvt.s32.f32 %v1110
      %1113 = vmin.xlane.f32.xlu0 %v1112
      %v1114 = vpop.xlane.xlu0 %1113
      %vm1115 = vcmp.eq.f32.partialorder %v1112, %v1114
      %v1116 = vsel %vm1115, %v1111, inf
      %1117 = vmin.xlane.f32.xlu0 %v1116
      %v1118 = vpop.xlane.xlu0 %1117
      %v1119 = vcvt.f32.s32 %v1118
      %v1120 = vcvt.f32.s32 %v1114
      %v1121 = vshll.u32 %v1120, 16
      %v1122 = vadd.s32 %v1121, %v1119
      %v1123 = vsel %vm952, %v1023, 2147483647
      %v1124 = vand.u32 %v1123, 65535
      %v1125 = vshra.s32 %v1123, 16
      %v1126 = vcvt.s32.f32 %v1124
      %v1127 = vcvt.s32.f32 %v1125
      %1128 = vmin.xlane.f32.xlu0 %v1127
      %v1129 = vpop.xlane.xlu0 %1128
      %vm1130 = vcmp.eq.f32.partialorder %v1127, %v1129
      %v1131 = vsel %vm1130, %v1126, inf
      %1132 = vmin.xlane.f32.xlu0 %v1131
      %v1133 = vpop.xlane.xlu0 %1132
      %v1134 = vcvt.f32.s32 %v1133
      %v1135 = vcvt.f32.s32 %v1129
      %v1136 = vshll.u32 %v1135, 16
      %v1137 = vadd.s32 %v1136, %v1134
      %v1138 = vsel %vm952, %v1024, 2147483647
      %v1139 = vand.u32 %v1138, 65535
      %v1140 = vshra.s32 %v1138, 16
      %v1141 = vcvt.s32.f32 %v1139
      %v1142 = vcvt.s32.f32 %v1140
      %1143 = vmin.xlane.f32.xlu0 %v1142
      %v1144 = vpop.xlane.xlu0 %1143
      %vm1145 = vcmp.eq.f32.partialorder %v1142, %v1144
      %v1146 = vsel %vm1145, %v1141, inf
      %1147 = vmin.xlane.f32.xlu0 %v1146
      %v1148 = vpop.xlane.xlu0 %1147
      %v1149 = vcvt.f32.s32 %v1148
      %v1150 = vcvt.f32.s32 %v1144
      %v1151 = vshll.u32 %v1150, 16
      %v1152 = vadd.s32 %v1151, %v1149
      %v1153 = vsel %vm952, %v1025, 2147483647
      %v1154 = vand.u32 %v1153, 65535
      %v1155 = vshra.s32 %v1153, 16
      %v1156 = vcvt.s32.f32 %v1154
      %v1157 = vcvt.s32.f32 %v1155
      %1158 = vmin.xlane.f32.xlu0 %v1157
      %v1159 = vpop.xlane.xlu0 %1158
      %vm1160 = vcmp.eq.f32.partialorder %v1157, %v1159
      %v1161 = vsel %vm1160, %v1156, inf
      %1162 = vmin.xlane.f32.xlu0 %v1161
      %v1163 = vpop.xlane.xlu0 %1162
      %v1164 = vcvt.f32.s32 %v1163
      %v1165 = vcvt.f32.s32 %v1159
      %v1166 = vshll.u32 %v1165, 16
      %v1167 = vadd.s32 %v1166, %v1164
      %v1168 = vsel %vm952, %v1026, 2147483647
      %v1169 = vand.u32 %v1168, 65535
      %v1170 = vshra.s32 %v1168, 16
      %v1171 = vcvt.s32.f32 %v1169
      %v1172 = vcvt.s32.f32 %v1170
      %1173 = vmin.xlane.f32.xlu0 %v1172
      %v1174 = vpop.xlane.xlu0 %1173
      %vm1175 = vcmp.eq.f32.partialorder %v1172, %v1174
      %v1176 = vsel %vm1175, %v1171, inf
      %1177 = vmin.xlane.f32.xlu0 %v1176
      %v1178 = vpop.xlane.xlu0 %1177
      %v1179 = vcvt.f32.s32 %v1178
      %v1180 = vcvt.f32.s32 %v1174
      %v1181 = vshll.u32 %v1180, 16
      %v1182 = vadd.s32 %v1181, %v1179
      %v1183 = vsel %vm952, %v1027, 2147483647
      %v1184 = vand.u32 %v1183, 65535
      %v1185 = vshra.s32 %v1183, 16
      %v1186 = vcvt.s32.f32 %v1184
      %v1187 = vcvt.s32.f32 %v1185
      %1188 = vmin.xlane.f32.xlu0 %v1187
      %v1189 = vpop.xlane.xlu0 %1188
      %vm1190 = vcmp.eq.f32.partialorder %v1187, %v1189
      %v1191 = vsel %vm1190, %v1186, inf
      %1192 = vmin.xlane.f32.xlu0 %v1191
      %v1193 = vpop.xlane.xlu0 %1192
      %v1194 = vcvt.f32.s32 %v1193
      %v1195 = vcvt.f32.s32 %v1189
      %v1196 = vshll.u32 %v1195, 16
      %v1197 = vadd.s32 %v1196, %v1194
      %v1198 = vsel %vm952, %v1028, 2147483647
      %v1199 = vand.u32 %v1198, 65535
      %v1200 = vshra.s32 %v1198, 16
      %v1201 = vcvt.s32.f32 %v1199
      %v1202 = vcvt.s32.f32 %v1200
      %1203 = vmin.xlane.f32.xlu0 %v1202
      %v1204 = vpop.xlane.xlu0 %1203
      %vm1205 = vcmp.eq.f32.partialorder %v1202, %v1204
      %v1206 = vsel %vm1205, %v1201, inf
      %1207 = vmin.xlane.f32.xlu0 %v1206
      %v1208 = vpop.xlane.xlu0 %1207
      %v1209 = vcvt.f32.s32 %v1208
      %v1210 = vcvt.f32.s32 %v1204
      %v1211 = vshll.u32 %v1210, 16
      %v1212 = vadd.s32 %v1211, %v1209
      %v1213 = vsel %vm952, %v1029, 2147483647
      %v1214 = vand.u32 %v1213, 65535
      %v1215 = vshra.s32 %v1213, 16
      %v1216 = vcvt.s32.f32 %v1214
      %v1217 = vcvt.s32.f32 %v1215
      %1218 = vmin.xlane.f32.xlu0 %v1217
      %v1219 = vpop.xlane.xlu0 %1218
      %vm1220 = vcmp.eq.f32.partialorder %v1217, %v1219
      %v1221 = vsel %vm1220, %v1216, inf
      %1222 = vmin.xlane.f32.xlu0 %v1221
      %v1223 = vpop.xlane.xlu0 %1222
      %v1224 = vcvt.f32.s32 %v1223
      %v1225 = vcvt.f32.s32 %v1219
      %v1226 = vshll.u32 %v1225, 16
      %v1227 = vadd.s32 %v1226, %v1224
      %v1228 = vsel %vm952, %v1030, 2147483647
      %v1229 = vand.u32 %v1228, 65535
      %v1230 = vshra.s32 %v1228, 16
      %v1231 = vcvt.s32.f32 %v1229
      %v1232 = vcvt.s32.f32 %v1230
      %1233 = vmin.xlane.f32.xlu0 %v1232
      %v1234 = vpop.xlane.xlu0 %1233
      %vm1235 = vcmp.eq.f32.partialorder %v1232, %v1234
      %v1236 = vsel %vm1235, %v1231, inf
      %1237 = vmin.xlane.f32.xlu0 %v1236
      %v1238 = vpop.xlane.xlu0 %1237
      %v1239 = vcvt.f32.s32 %v1238
      %v1240 = vcvt.f32.s32 %v1234
      %v1241 = vshll.u32 %v1240, 16
      %v1242 = vadd.s32 %v1241, %v1239
      %v1243 = vsel %vm952, %v1031, 2147483647
      %v1244 = vand.u32 %v1243, 65535
      %v1245 = vshra.s32 %v1243, 16
      %v1246 = vcvt.s32.f32 %v1244
      %v1247 = vcvt.s32.f32 %v1245
      %1248 = vmin.xlane.f32.xlu0 %v1247
      %v1249 = vpop.xlane.xlu0 %1248
      %vm1250 = vcmp.eq.f32.partialorder %v1247, %v1249
      %v1251 = vsel %vm1250, %v1246, inf
      %1252 = vmin.xlane.f32.xlu0 %v1251
      %v1253 = vpop.xlane.xlu0 %1252
      %v1254 = vcvt.f32.s32 %v1253
      %v1255 = vcvt.f32.s32 %v1249
      %v1256 = vshll.u32 %v1255, 16
      %v1257 = vadd.s32 %v1256, %v1254
      %v1258 = vsel %vm952, %v1032, 2147483647
      %v1259 = vand.u32 %v1258, 65535
      %v1260 = vshra.s32 %v1258, 16
      %v1261 = vcvt.s32.f32 %v1259
      %v1262 = vcvt.s32.f32 %v1260
      %1263 = vmin.xlane.f32.xlu0 %v1262
      %v1264 = vpop.xlane.xlu0 %1263
      %vm1265 = vcmp.eq.f32.partialorder %v1262, %v1264
      %v1266 = vsel %vm1265, %v1261, inf
      %1267 = vmin.xlane.f32.xlu0 %v1266
      %v1268 = vpop.xlane.xlu0 %1267
      %v1269 = vcvt.f32.s32 %v1268
      %v1270 = vcvt.f32.s32 %v1264
      %v1271 = vshll.u32 %v1270, 16
      %v1272 = vadd.s32 %v1271, %v1269
      %vm1273 = vcmp.eq.s32.totalorder %v951, %v1047
      %vm1274 = vcmp.eq.s32.totalorder %v951, %v1062
      %vm1275 = vcmp.eq.s32.totalorder %v951, %v1077
      %vm1276 = vcmp.eq.s32.totalorder %v951, %v1092
      %vm1277 = vcmp.eq.s32.totalorder %v951, %v1107
      %vm1278 = vcmp.eq.s32.totalorder %v951, %v1122
      %vm1279 = vcmp.eq.s32.totalorder %v951, %v1137
      %vm1280 = vcmp.eq.s32.totalorder %v951, %v1152
      %vm1281 = vcmp.eq.s32.totalorder %v951, %v1167
      %vm1282 = vcmp.eq.s32.totalorder %v951, %v1182
      %vm1283 = vcmp.eq.s32.totalorder %v951, %v1197
      %vm1284 = vcmp.eq.s32.totalorder %v951, %v1212
      %vm1285 = vcmp.eq.s32.totalorder %v951, %v1227
      %vm1286 = vcmp.eq.s32.totalorder %v951, %v1242
      %vm1287 = vcmp.eq.s32.totalorder %v951, %v1257
      %vm1288 = vcmp.eq.s32.totalorder %v951, %v1272
      %v1289 = vsel %vm1273, 1, 0
      %v1290 = vsel %vm1274, 1, 0
      %v1291 = vsel %vm1275, 1, 0
      %v1292 = vsel %vm1276, 1, 0
      %v1293 = vsel %vm1277, 1, 0
      %v1294 = vsel %vm1278, 1, 0
      %v1295 = vsel %vm1279, 1, 0
      %v1296 = vsel %vm1280, 1, 0
      %v1297 = vsel %vm1281, 1, 0
      %v1298 = vsel %vm1282, 1, 0
      %v1299 = vsel %vm1283, 1, 0
      %v1300 = vsel %vm1284, 1, 0
      %v1301 = vsel %vm1285, 1, 0
      %v1302 = vsel %vm1286, 1, 0
      %v1303 = vsel %vm1287, 1, 0
      %v1304 = vsel %vm1288, 1, 0
      %v1305 = vcvt.s32.f32 %v1289
      %v1306 = vcvt.s32.f32 %v1290
      %v1307 = vcvt.s32.f32 %v1291
      %v1308 = vcvt.s32.f32 %v1292
      %v1309 = vcvt.s32.f32 %v1293
      %v1310 = vcvt.s32.f32 %v1294
      %v1311 = vcvt.s32.f32 %v1295
      %v1312 = vcvt.s32.f32 %v1296
      %v1313 = vcvt.s32.f32 %v1297
      %v1314 = vcvt.s32.f32 %v1298
      %v1315 = vcvt.s32.f32 %v1299
      %v1316 = vcvt.s32.f32 %v1300
      %v1317 = vcvt.s32.f32 %v1301
      %v1318 = vcvt.s32.f32 %v1302
      %v1319 = vcvt.s32.f32 %v1303
      %v1320 = vcvt.s32.f32 %v1304
      %v1322 = vsel %vm952, %v1305, 0
      %v1325 = vsel %vm952, %v1306, 0
      %v1328 = vsel %vm952, %v1307, 0
      %v1331 = vsel %vm952, %v1308, 0
      %v1334 = vsel %vm952, %v1309, 0
      %v1337 = vsel %vm952, %v1310, 0
      %v1340 = vsel %vm952, %v1311, 0
      %v1343 = vsel %vm952, %v1312, 0
      %v1346 = vsel %vm952, %v1313, 0
      %v1349 = vsel %vm952, %v1314, 0
      %v1352 = vsel %vm952, %v1315, 0
      %v1355 = vsel %vm952, %v1316, 0
      %v1358 = vsel %vm952, %v1317, 0
      %v1361 = vsel %vm952, %v1318, 0
      %v1364 = vsel %vm952, %v1319, 0
      %v1367 = vsel %vm952, %v1320, 0
      %1369 = vmatprep.subr.mxu0 0.0
      %1370 = vmatpush1.msra.mxu0 %v308
      %1371 = vmatprep.subr.mxu0 0.0
      %1372 = vmatpush1.msra.mxu0 0.0
      %1373 = vmatprep.subr.mxu0 0.0
      %1374 = vmatpush1.msra.mxu0 0.0
      %1375 = vmatprep.subr.mxu0 0.0
      %1376 = vmatpush1.msra.mxu0 0.0
      %1377 = vmatprep.subr.mxu0 0.0
      %1378 = vmatpush1.msra.mxu0 0.0
      %1379 = vmatprep.subr.mxu0 0.0
      %1380 = vmatpush1.msra.mxu0 0.0
      %1381 = vmatprep.subr.mxu0 0.0
      %1382 = vmatpush1.msra.mxu0 0.0
      %1383 = vmatprep.subr.mxu0 0.0
      %1384 = vmatpush1.msra.mxu0 0.0
      %1385 = vmatprep.subr.mxu0 0.0
      %1386 = vmatpush1.msra.mxu0 0.0
      %1387 = vmatprep.subr.mxu0 0.0
      %1388 = vmatpush1.msra.mxu0 0.0
      %1389 = vmatprep.subr.mxu0 0.0
      %1390 = vmatpush1.msra.mxu0 0.0
      %1391 = vmatprep.subr.mxu0 0.0
      %1392 = vmatpush1.msra.mxu0 0.0
      %1393 = vmatprep.subr.mxu0 0.0
      %1394 = vmatpush1.msra.mxu0 0.0
      %1395 = vmatprep.subr.mxu0 0.0
      %1396 = vmatpush1.msra.mxu0 0.0
      %1397 = vmatprep.subr.mxu0 0.0
      %1398 = vmatpush1.msra.mxu0 0.0
      %1399 = vmatprep.subr.mxu0 0.0
      %1400 = vmatpush1.msra.mxu0 0.0
      %1401 = vmatprep.subr.mxu0 0.0
      %1402 = vmatpush1.msra.mxu0 0.0
      %1403 = vmatprep.subr.mxu0 0.0
      %1404 = vmatpush1.msra.mxu0 0.0
      %1405 = vmatprep.subr.mxu0 0.0
      %1406 = vmatpush1.msra.mxu0 0.0
      %1407 = vmatprep.subr.mxu0 0.0
      %1408 = vmatpush1.msra.mxu0 0.0
      %1409 = vmatprep.subr.mxu0 0.0
      %1410 = vmatpush1.msra.mxu0 0.0
      %1411 = vmatprep.subr.mxu0 0.0
      %1412 = vmatpush1.msra.mxu0 0.0
      %1413 = vmatprep.subr.mxu0 0.0
      %1414 = vmatpush1.msra.mxu0 0.0
      %1415 = vmatprep.subr.mxu0 0.0
      %1416 = vmatpush1.msra.mxu0 0.0
      %1417 = vmatprep.subr.mxu0 0.0
      %1418 = vmatpush1.msra.mxu0 0.0
      %1419 = vmatprep.subr.mxu0 0.0
      %1420 = vmatpush1.msra.mxu0 0.0
      %1421 = vmatprep.subr.mxu0 0.0
      %1422 = vmatpush1.msra.mxu0 0.0
      %1423 = vmatprep.subr.mxu0 0.0
      %1424 = vmatpush1.msra.mxu0 0.0
      %1425 = vmatprep.subr.mxu0 0.0
      %1426 = vmatpush1.msra.mxu0 0.0
      %1427 = vmatprep.subr.mxu0 0.0
      %1428 = vmatpush1.msra.mxu0 0.0
      %1429 = vmatprep.subr.mxu0 0.0
      %1430 = vmatpush1.msra.mxu0 0.0
      %1431 = vmatprep.subr.mxu0 0.0
      %1432 = vmatpush1.msra.mxu0 0.0
      %1433 = vmatprep.mubr.f32.mxu0 0.0
      %1434 = vmatmul.mubr.f32.gmra.mrb[0].mxu0 %v1322
      %v1435 = vpop.f32.mrb[0].mxu0
      %v1436 = vadd.f32 0.0, %v1435
      %v1437 = vpop.f32.mrb[0].mxu0
      %1438 = vmatprep.mubr.f32.mxu0 0.0
      %1439 = vmatmul.mubr.f32.gmra.mrb[0].mxu0 %v1325
      %v1440 = vpop.f32.mrb[0].mxu0
      %v1441 = vadd.f32 0.0, %v1440
      %v1442 = vpop.f32.mrb[0].mxu0
      %1443 = vmatprep.mubr.f32.mxu0 0.0
      %1444 = vmatmul.mubr.f32.gmra.mrb[0].mxu0 %v1328
      %v1445 = vpop.f32.mrb[0].mxu0
      %v1446 = vadd.f32 0.0, %v1445
      %v1447 = vpop.f32.mrb[0].mxu0
      %1448 = vmatprep.mubr.f32.mxu0 0.0
      %1449 = vmatmul.mubr.f32.gmra.mrb[0].mxu0 %v1331
      %v1450 = vpop.f32.mrb[0].mxu0
      %v1451 = vadd.f32 0.0, %v1450
      %v1452 = vpop.f32.mrb[0].mxu0
      %1453 = vmatprep.mubr.f32.mxu0 0.0
      %1454 = vmatmul.mubr.f32.gmra.mrb[0].mxu0 %v1334
      %v1455 = vpop.f32.mrb[0].mxu0
      %v1456 = vadd.f32 0.0, %v1455
      %v1457 = vpop.f32.mrb[0].mxu0
      %1458 = vmatprep.mubr.f32.mxu0 0.0
      %1459 = vmatmul.mubr.f32.gmra.mrb[0].mxu0 %v1337
      %v1460 = vpop.f32.mrb[0].mxu0
      %v1461 = vadd.f32 0.0, %v1460
      %v1462 = vpop.f32.mrb[0].mxu0
      %1463 = vmatprep.mubr.f32.mxu0 0.0
      %1464 = vmatmul.mubr.f32.gmra.mrb[0].mxu0 %v1340
      %v1465 = vpop.f32.mrb[0].mxu0
      %v1466 = vadd.f32 0.0, %v1465
      %v1467 = vpop.f32.mrb[0].mxu0
      %1468 = vmatprep.mubr.f32.mxu0 0.0
      %1469 = vmatmul.mubr.f32.gmra.mrb[0].mxu0 %v1343
      %v1470 = vpop.f32.mrb[0].mxu0
      %v1471 = vadd.f32 0.0, %v1470
      %v1472 = vpop.f32.mrb[0].mxu0
      %1473 = vmatprep.mubr.f32.mxu0 0.0
      %1474 = vmatmul.mubr.f32.gmra.mrb[0].mxu0 %v1346
      %v1475 = vpop.f32.mrb[0].mxu0
      %v1476 = vadd.f32 0.0, %v1475
      %v1477 = vpop.f32.mrb[0].mxu0
      %1478 = vmatprep.mubr.f32.mxu0 0.0
      %1479 = vmatmul.mubr.f32.gmra.mrb[0].mxu0 %v1349
      %v1480 = vpop.f32.mrb[0].mxu0
      %v1481 = vadd.f32 0.0, %v1480
      %v1482 = vpop.f32.mrb[0].mxu0
      %1483 = vmatprep.mubr.f32.mxu0 0.0
      %1484 = vmatmul.mubr.f32.gmra.mrb[0].mxu0 %v1352
      %v1485 = vpop.f32.mrb[0].mxu0
      %v1486 = vadd.f32 0.0, %v1485
      %v1487 = vpop.f32.mrb[0].mxu0
      %1488 = vmatprep.mubr.f32.mxu0 0.0
      %1489 = vmatmul.mubr.f32.gmra.mrb[0].mxu0 %v1355
      %v1490 = vpop.f32.mrb[0].mxu0
      %v1491 = vadd.f32 0.0, %v1490
      %v1492 = vpop.f32.mrb[0].mxu0
      %1493 = vmatprep.mubr.f32.mxu0 0.0
      %1494 = vmatmul.mubr.f32.gmra.mrb[0].mxu0 %v1358
      %v1495 = vpop.f32.mrb[0].mxu0
      %v1496 = vadd.f32 0.0, %v1495
      %v1497 = vpop.f32.mrb[0].mxu0
      %1498 = vmatprep.mubr.f32.mxu0 0.0
      %1499 = vmatmul.mubr.f32.gmra.mrb[0].mxu0 %v1361
      %v1500 = vpop.f32.mrb[0].mxu0
      %v1501 = vadd.f32 0.0, %v1500
      %v1502 = vpop.f32.mrb[0].mxu0
      %1503 = vmatprep.mubr.f32.mxu0 0.0
      %1504 = vmatmul.mubr.f32.gmra.mrb[0].mxu0 %v1364
      %v1505 = vpop.f32.mrb[0].mxu0
      %v1506 = vadd.f32 0.0, %v1505
      %v1507 = vpop.f32.mrb[0].mxu0
      %1508 = vmatprep.mubr.f32.mxu0 0.0
      %1509 = vmatmul.mubr.f32.gmra.mrb[0].mxu0 %v1367
      %v1510 = vpop.f32.mrb[0].mxu0
      %v1511 = vadd.f32 0.0, %v1510
      %v1512 = vpop.f32.mrb[0].mxu0
      %1513 = vdwg.mxu0
      %1514 = vset.pattern.permute.xlu0 0
      %1515 = vperm.xlu0 %1514, %v277
      %v1516 = vpop.permute.xlu0 %1515
      %1517 = vset.pattern.permute.xlu0 0
      %1518 = vperm.xlu0 %1517, %v278
      %v1519 = vpop.permute.xlu0 %1518
      %1520 = vset.pattern.permute.xlu0 0
      %1521 = vperm.xlu0 %1520, %v279
      %v1522 = vpop.permute.xlu0 %1521
      %1523 = vset.pattern.permute.xlu0 0
      %1524 = vperm.xlu0 %1523, %v280
      %v1525 = vpop.permute.xlu0 %1524
      %1526 = vset.pattern.permute.xlu0 0
      %1527 = vperm.xlu0 %1526, %v281
      %v1528 = vpop.permute.xlu0 %1527
      %1529 = vset.pattern.permute.xlu0 0
      %1530 = vperm.xlu0 %1529, %v282
      %v1531 = vpop.permute.xlu0 %1530
      %1532 = vset.pattern.permute.xlu0 0
      %1533 = vperm.xlu0 %1532, %v283
      %v1534 = vpop.permute.xlu0 %1533
      %1535 = vset.pattern.permute.xlu0 0
      %1536 = vperm.xlu0 %1535, %v284
      %v1537 = vpop.permute.xlu0 %1536
      %1538 = vset.pattern.permute.xlu0 0
      %1539 = vperm.xlu0 %1538, %v285
      %v1540 = vpop.permute.xlu0 %1539
      %1541 = vset.pattern.permute.xlu0 0
      %1542 = vperm.xlu0 %1541, %v286
      %v1543 = vpop.permute.xlu0 %1542
      %1544 = vset.pattern.permute.xlu0 0
      %1545 = vperm.xlu0 %1544, %v287
      %v1546 = vpop.permute.xlu0 %1545
      %1547 = vset.pattern.permute.xlu0 0
      %1548 = vperm.xlu0 %1547, %v288
      %v1549 = vpop.permute.xlu0 %1548
      %1550 = vset.pattern.permute.xlu0 0
      %1551 = vperm.xlu0 %1550, %v289
      %v1552 = vpop.permute.xlu0 %1551
      %1553 = vset.pattern.permute.xlu0 0
      %1554 = vperm.xlu0 %1553, %v290
      %v1555 = vpop.permute.xlu0 %1554
      %1556 = vset.pattern.permute.xlu0 0
      %1557 = vperm.xlu0 %1556, %v291
      %v1558 = vpop.permute.xlu0 %1557
      %1559 = vset.pattern.permute.xlu0 0
      %1560 = vperm.xlu0 %1559, %v292
      %v1561 = vpop.permute.xlu0 %1560
      %vm1562 = vcmp.eq.s32.totalorder %v951, %v1516
      %vm1563 = vcmp.eq.s32.totalorder %v951, %v1519
      %vm1564 = vcmp.eq.s32.totalorder %v951, %v1522
      %vm1565 = vcmp.eq.s32.totalorder %v951, %v1525
      %vm1566 = vcmp.eq.s32.totalorder %v951, %v1528
      %vm1567 = vcmp.eq.s32.totalorder %v951, %v1531
      %vm1568 = vcmp.eq.s32.totalorder %v951, %v1534
      %vm1569 = vcmp.eq.s32.totalorder %v951, %v1537
      %vm1570 = vcmp.eq.s32.totalorder %v951, %v1540
      %vm1571 = vcmp.eq.s32.totalorder %v951, %v1543
      %vm1572 = vcmp.eq.s32.totalorder %v951, %v1546
      %vm1573 = vcmp.eq.s32.totalorder %v951, %v1549
      %vm1574 = vcmp.eq.s32.totalorder %v951, %v1552
      %vm1575 = vcmp.eq.s32.totalorder %v951, %v1555
      %vm1576 = vcmp.eq.s32.totalorder %v951, %v1558
      %vm1577 = vcmp.eq.s32.totalorder %v951, %v1561
      %v1578 = vlaneseq
      %v1579 = vshrl.u32 %v1578, 7
      %v1580 = vsub.s32 0, %v1579
      %v1581 = vrot.slane %v309, %v1580
      %v1582 = vsel %vm1562, %v1581, 0.0
      %v1583 = vsel %vm1563, %v1581, 0.0
      %v1584 = vsel %vm1564, %v1581, 0.0
      %v1585 = vsel %vm1565, %v1581, 0.0
      %v1586 = vsel %vm1566, %v1581, 0.0
      %v1587 = vsel %vm1567, %v1581, 0.0
      %v1588 = vsel %vm1568, %v1581, 0.0
      %v1589 = vsel %vm1569, %v1581, 0.0
      %v1590 = vsel %vm1570, %v1581, 0.0
      %v1591 = vsel %vm1571, %v1581, 0.0
      %v1592 = vsel %vm1572, %v1581, 0.0
      %v1593 = vsel %vm1573, %v1581, 0.0
      %v1594 = vsel %vm1574, %v1581, 0.0
      %v1595 = vsel %vm1575, %v1581, 0.0
      %v1596 = vsel %vm1576, %v1581, 0.0
      %v1597 = vsel %vm1577, %v1581, 0.0
      %vm1598 = vcmask 130048
      %v1599 = vsel %vm1598, %v1582, -inf
      %1600 = vmax.xlane.f32.xlu0 %v1599
      %v1601 = vpop.xlane.xlu0 %1600
      %v1602 = vsel %vm1598, %v1583, -inf
      %1603 = vmax.xlane.f32.xlu0 %v1602
      %v1604 = vpop.xlane.xlu0 %1603
      %v1605 = vsel %vm1598, %v1584, -inf
      %1606 = vmax.xlane.f32.xlu0 %v1605
      %v1607 = vpop.xlane.xlu0 %1606
      %v1608 = vsel %vm1598, %v1585, -inf
      %1609 = vmax.xlane.f32.xlu0 %v1608
      %v1610 = vpop.xlane.xlu0 %1609
      %v1611 = vsel %vm1598, %v1586, -inf
      %1612 = vmax.xlane.f32.xlu0 %v1611
      %v1613 = vpop.xlane.xlu0 %1612
      %v1614 = vsel %vm1598, %v1587, -inf
      %1615 = vmax.xlane.f32.xlu0 %v1614
      %v1616 = vpop.xlane.xlu0 %1615
      %v1617 = vsel %vm1598, %v1588, -inf
      %1618 = vmax.xlane.f32.xlu0 %v1617
      %v1619 = vpop.xlane.xlu0 %1618
      %v1620 = vsel %vm1598, %v1589, -inf
      %1621 = vmax.xlane.f32.xlu0 %v1620
      %v1622 = vpop.xlane.xlu0 %1621
      %v1623 = vsel %vm1598, %v1590, -inf
      %1624 = vmax.xlane.f32.xlu0 %v1623
      %v1625 = vpop.xlane.xlu0 %1624
      %v1626 = vsel %vm1598, %v1591, -inf
      %1627 = vmax.xlane.f32.xlu0 %v1626
      %v1628 = vpop.xlane.xlu0 %1627
      %v1629 = vsel %vm1598, %v1592, -inf
      %1630 = vmax.xlane.f32.xlu0 %v1629
      %v1631 = vpop.xlane.xlu0 %1630
      %v1632 = vsel %vm1598, %v1593, -inf
      %1633 = vmax.xlane.f32.xlu0 %v1632
      %v1634 = vpop.xlane.xlu0 %1633
      %v1635 = vsel %vm1598, %v1594, -inf
      %1636 = vmax.xlane.f32.xlu0 %v1635
      %v1637 = vpop.xlane.xlu0 %1636
      %v1638 = vsel %vm1598, %v1595, -inf
      %1639 = vmax.xlane.f32.xlu0 %v1638
      %v1640 = vpop.xlane.xlu0 %1639
      %v1641 = vsel %vm1598, %v1596, -inf
      %1642 = vmax.xlane.f32.xlu0 %v1641
      %v1643 = vpop.xlane.xlu0 %1642
      %v1644 = vsel %vm1598, %v1597, -inf
      %1645 = vmax.xlane.f32.xlu0 %v1644
      %v1646 = vpop.xlane.xlu0 %1645
      %v1647 = vmul.f32 %v1601, %v1436
      %v1648 = vmul.f32 %v1604, %v1441
      %v1649 = vmul.f32 %v1607, %v1446
      %v1650 = vmul.f32 %v1610, %v1451
      %v1651 = vmul.f32 %v1613, %v1456
      %v1652 = vmul.f32 %v1616, %v1461
      %v1653 = vmul.f32 %v1619, %v1466
      %v1654 = vmul.f32 %v1622, %v1471
      %v1655 = vmul.f32 %v1625, %v1476
      %v1656 = vmul.f32 %v1628, %v1481
      %v1657 = vmul.f32 %v1631, %v1486
      %v1658 = vmul.f32 %v1634, %v1491
      %v1659 = vmul.f32 %v1637, %v1496
      %v1660 = vmul.f32 %v1640, %v1501
      %v1661 = vmul.f32 %v1643, %v1506
      %v1662 = vmul.f32 %v1646, %v1511
      %v1663 = vadd.f32 %v245, %v1647
      %v1664 = vadd.f32 %v246, %v1648
      %v1665 = vadd.f32 %v247, %v1649
      %v1666 = vadd.f32 %v248, %v1650
      %v1667 = vadd.f32 %v249, %v1651
      %v1668 = vadd.f32 %v250, %v1652
      %v1669 = vadd.f32 %v251, %v1653
      %v1670 = vadd.f32 %v252, %v1654
      %v1671 = vadd.f32 %v253, %v1655
      %v1672 = vadd.f32 %v254, %v1656
      %v1673 = vadd.f32 %v255, %v1657
      %v1674 = vadd.f32 %v256, %v1658
      %v1675 = vadd.f32 %v257, %v1659
      %v1676 = vadd.f32 %v258, %v1660
      %v1677 = vadd.f32 %v259, %v1661
      %v1678 = vadd.f32 %v260, %v1662
      %v1679 = vcvt.s32.f32 %v1047
      %v1680 = vcvt.s32.f32 %v1062
      %v1681 = vcvt.s32.f32 %v1077
      %v1682 = vcvt.s32.f32 %v1092
      %v1683 = vcvt.s32.f32 %v1107
      %v1684 = vcvt.s32.f32 %v1122
      %v1685 = vcvt.s32.f32 %v1137
      %v1686 = vcvt.s32.f32 %v1152
      %v1687 = vcvt.s32.f32 %v1167
      %v1688 = vcvt.s32.f32 %v1182
      %v1689 = vcvt.s32.f32 %v1197
      %v1690 = vcvt.s32.f32 %v1212
      %v1691 = vcvt.s32.f32 %v1227
      %v1692 = vcvt.s32.f32 %v1242
      %v1693 = vcvt.s32.f32 %v1257
      %v1694 = vcvt.s32.f32 %v1272
      %1711 = vrot.lane.b32.xlu0 %v856, 32
      %v1712 = vpop.permute.xlu0 %1711
      %1713 = vrot.lane.b32.xlu0 %v861, 32
      %v1714 = vpop.permute.xlu0 %1713
      %1715 = vrot.lane.b32.xlu0 %v866, 32
      %v1716 = vpop.permute.xlu0 %1715
      %1717 = vrot.lane.b32.xlu0 %v871, 32
      %v1718 = vpop.permute.xlu0 %1717
      %1719 = vrot.lane.b32.xlu0 %v876, 32
      %v1720 = vpop.permute.xlu0 %1719
      %1721 = vrot.lane.b32.xlu0 %v881, 32
      %v1722 = vpop.permute.xlu0 %1721
      %1723 = vrot.lane.b32.xlu0 %v886, 32
      %v1724 = vpop.permute.xlu0 %1723
      %1725 = vrot.lane.b32.xlu0 %v891, 32
      %v1726 = vpop.permute.xlu0 %1725
      %1727 = vrot.lane.b32.xlu0 %v896, 32
      %v1728 = vpop.permute.xlu0 %1727
      %1729 = vrot.lane.b32.xlu0 %v901, 32
      %v1730 = vpop.permute.xlu0 %1729
      %1731 = vrot.lane.b32.xlu0 %v906, 32
      %v1732 = vpop.permute.xlu0 %1731
      %1733 = vrot.lane.b32.xlu0 %v911, 32
      %v1734 = vpop.permute.xlu0 %1733
      %1735 = vrot.lane.b32.xlu0 %v916, 32
      %v1736 = vpop.permute.xlu0 %1735
      %1737 = vrot.lane.b32.xlu0 %v921, 32
      %v1738 = vpop.permute.xlu0 %1737
      %1739 = vrot.lane.b32.xlu0 %v926, 32
      %v1740 = vpop.permute.xlu0 %1739
      %1741 = vrot.lane.b32.xlu0 %v931, 32
      %v1742 = vpop.permute.xlu0 %1741
      %v1759 = vsel %vm314, %v1663, %v1712
      %v1760 = vsel %vm314, %v1664, %v1714
      %v1761 = vsel %vm314, %v1665, %v1716
      %v1762 = vsel %vm314, %v1666, %v1718
      %v1763 = vsel %vm314, %v1667, %v1720
      %v1764 = vsel %vm314, %v1668, %v1722
      %v1765 = vsel %vm314, %v1669, %v1724
      %v1766 = vsel %vm314, %v1670, %v1726
      %v1767 = vsel %vm314, %v1671, %v1728
      %v1768 = vsel %vm314, %v1672, %v1730
      %v1769 = vsel %vm314, %v1673, %v1732
      %v1770 = vsel %vm314, %v1674, %v1734
      %v1771 = vsel %vm314, %v1675, %v1736
      %v1772 = vsel %vm314, %v1676, %v1738
      %v1773 = vsel %vm314, %v1677, %v1740
      %v1774 = vsel %vm314, %v1678, %v1742
      %vm1775 = vcmask 326656
      %v1776 = vsel %vm1775, %v1759, %v1679
      %v1777 = vsel %vm1775, %v1760, %v1680
      %v1778 = vsel %vm1775, %v1761, %v1681
      %v1779 = vsel %vm1775, %v1762, %v1682
      %v1780 = vsel %vm1775, %v1763, %v1683
      %v1781 = vsel %vm1775, %v1764, %v1684
      %v1782 = vsel %vm1775, %v1765, %v1685
      %v1783 = vsel %vm1775, %v1766, %v1686
      %v1784 = vsel %vm1775, %v1767, %v1687
      %v1785 = vsel %vm1775, %v1768, %v1688
      %v1786 = vsel %vm1775, %v1769, %v1689
      %v1787 = vsel %vm1775, %v1770, %v1690
      %v1788 = vsel %vm1775, %v1771, %v1691
      %v1789 = vsel %vm1775, %v1772, %v1692
      %v1790 = vsel %vm1775, %v1773, %v1693
      %v1791 = vsel %vm1775, %v1774, %v1694
      %vm1792 = vcmask 334848
      %v1793 = vsel %vm1792, %v1776, 0.0
      %v1794 = vsel %vm1792, %v1777, 0.0
      %v1795 = vsel %vm1792, %v1778, 0.0
      %v1796 = vsel %vm1792, %v1779, 0.0
      %v1797 = vsel %vm1792, %v1780, 0.0
      %v1798 = vsel %vm1792, %v1781, 0.0
      %v1799 = vsel %vm1792, %v1782, 0.0
      %v1800 = vsel %vm1792, %v1783, 0.0
      %v1801 = vsel %vm1792, %v1784, 0.0
      %v1802 = vsel %vm1792, %v1785, 0.0
      %v1803 = vsel %vm1792, %v1786, 0.0
      %v1804 = vsel %vm1792, %v1787, 0.0
      %v1805 = vsel %vm1792, %v1788, 0.0
      %v1806 = vsel %vm1792, %v1789, 0.0
      %v1807 = vsel %vm1792, %v1790, 0.0
      %v1808 = vsel %vm1792, %v1791, 0.0
      %1809 = vst [vmem:[%s243] sm:$0xff] %v1793
      %1810 = vst [vmem:[%s243 + $0x8] sm:$0xff] %v1794
      %1811 = vst [vmem:[%s243 + $0x10] sm:$0xff] %v1795
      %1812 = vst [vmem:[%s243 + $0x18] sm:$0xff] %v1796
      %1813 = vst [vmem:[%s243 + $0x20] sm:$0xff] %v1797
      %1814 = vst [vmem:[%s243 + $0x28] sm:$0xff] %v1798
      %1815 = vst [vmem:[%s243 + $0x30] sm:$0xff] %v1799
      %1816 = vst [vmem:[%s243 + $0x38] sm:$0xff] %v1800
      %1817 = vst [vmem:[%s243 + $0x40] sm:$0xff] %v1801
      %1818 = vst [vmem:[%s243 + $0x48] sm:$0xff] %v1802
      %1819 = vst [vmem:[%s243 + $0x50] sm:$0xff] %v1803
      %1820 = vst [vmem:[%s243 + $0x58] sm:$0xff] %v1804
      %1821 = vst [vmem:[%s243 + $0x60] sm:$0xff] %v1805
      %1822 = vst [vmem:[%s243 + $0x68] sm:$0xff] %v1806
      %1823 = vst [vmem:[%s243 + $0x70] sm:$0xff] %v1807
      %1824 = vst [vmem:[%s243 + $0x78] sm:$0xff] %v1808
      %s1825 = smul.u32 16, %s15
      %p1826 = scmp.lt.s32.totalorder %s1825, 31
      %s1827 = scalar_select %p1826, %s1825, 31
      %s1828 = smul.addr %s1827, 8
      %s1829 = scalar_lea.vmem %s4, %s1828
      // Predicated region
      $region37: #{_queue_head_forward_impl.1} parent=35 // pred_check
        %p1830 = pneg %p132
      $region38: #{_queue_head_forward_impl.1} parent=35 // pred_check_branch
        %1832 = sbr.rel (%p1830) target = $region40
      $region39: #{_queue_head_forward_impl.1} parent=35 // pred_region
        %s1833 = smul.u32 16, %s15
      $region40: #{_queue_head_forward_impl.1} parent=35 // pred_fallthru
        _
    $region36: #{_queue_head_forward_impl.1} parent=5 // pred_fallthru
      _
    %p1834 = scmp.le.s32.totalorder 2, %s10
    // Predicated region
    $region41: #{_queue_head_forward_impl.1} parent=5 // pred_check
      %p1835 = pneg %p1834
    $region42: #{_queue_head_forward_impl.1} parent=5 // pred_check_branch
      %1837 = sbr.rel (%p1835) target = $region44
    $region43: #{_queue_head_forward_impl.1} parent=5 // pred_region
      %s1838 = ssub.s32 %s10, 2
      // Predicated region
      $region45: #{_queue_head_forward_impl.1} parent=43 // pred_check
        %p1839 = pneg %p138
      $region46: #{_queue_head_forward_impl.1} parent=43 // pred_check_branch
        %1841 = sbr.rel (%p1839) target = $region48
      $region47: #{_queue_head_forward_impl.1} parent=43 // pred_region
        %s1842 = smul.u32 16, %s16
        %p1843 = scmp.lt.s32.totalorder %s1842, 31
        %s1844 = scalar_select %p1843, %s1842, 31
        %s1845 = smul.addr %s1844, 8
        %s1846 = scalar_lea.vmem %s4, %s1845
      $region48: #{_queue_head_forward_impl.1} parent=43 // pred_fallthru
        _
    $region44: #{_queue_head_forward_impl.1} parent=5 // pred_fallthru
      _
  $region6: #{_queue_head_forward_impl.1} parent=0 // loop_footer
    %s14 = sadd.s32 1, %s10
  $region7: #{_queue_head_forward_impl.1} parent=0 // loop_footer_branch
    %9 = sbr.rel target = $region3
  $region8: #{_queue_head_forward_impl.1} parent=0 // loop_exit
    _

</llo_original>
